<compile_context>
chip_gen: v7x
topology: tpu7x:2x2x1
jax: 0.10.0
libtpu: 0.0.40
codegen_flags: <defaults>
</compile_context>

<pallas_src>
import functools

import jax
import jax.numpy as jnp
from jax.experimental import pallas as pl
from jax.experimental.pallas import tpu as pltpu


def _pair(v):
    return (v, v) if isinstance(v, int) else tuple(v)


def _extract_patches_kernel(x_ref, o_ref, *scratch, window_size, stride,
                            padding, row_tile, out_w, eps, use_scratch):
    """One (plane-block, row-tile) grid step.

    x_ref: (pblk, H, W)              raw input planes, resident across row tiles
    o_ref: (pblk, wh*ww, tr, Wout)   conv-layout output tile
    scratch (optional): (pblk, Hs, Ws) zero-padded plane buffer (VMEM)
    """
    wh, ww = window_size
    sh, sw = stride
    ph, pw = padding
    pblk, in_h, in_w = x_ref.shape
    tr = row_tile

    r = pl.program_id(1)

    if use_scratch:
        xs_ref = scratch[0]

        @pl.when(r == 0)
        def _fill_padded_plane():
            # Zero border (+ over-padding for the ragged last row tile), then
            # copy the interior.  VMEM-only: replaces the wrapper-side jnp.pad.
            xs_ref[...] = jnp.zeros(xs_ref.shape, xs_ref.dtype)
            xs_ref[:, ph:ph + in_h, pw:pw + in_w] = x_ref[...]

        src = xs_ref
    else:
        src = x_ref

    # First (padded-)input row touched by this output row tile.
    row_base = pl.multiple_of(r * (tr * sh), tr * sh)

    def win_slice(dy, dx):
        # Patch plane for window offset (dy, dx); shape (pblk, tr, Wout).
        if sh == 1:
            rows = pl.ds(row_base + dy, tr)
        else:
            rows = pl.ds(row_base + dy, tr, sh)
        if sw == 1:
            cols = slice(dx, dx + out_w)
        else:
            # TODO(synk): for sw > 1, pre-deinterleave W into sw contiguous
            # sub-planes once per plane instead of lane-strided reads here.
            cols = pl.ds(dx, out_w, sw)
        return src[:, rows, cols]

    # Pass 1: eps-sum accumulator -- single f32 plane, nothing else kept live.
    total = jnp.zeros((pblk, tr, out_w), jnp.float32)
    for dy in range(wh):
        for dx in range(ww):
            total = total + win_slice(dy, dx).astype(jnp.float32)

    if jnp.dtype(x_ref.dtype) == jnp.dtype(jnp.float32):
        eps_term = eps * total                       # exact f32 reference math

        def _out(p):
            return p + eps_term
    else:
        # Keep only the sum in f32; patches stay in the input dtype.
        eps_term = (eps * total).astype(x_ref.dtype)

        def _out(p):
            return p + eps_term

    # Pass 2: re-slice the VMEM-resident plane (cheap vld) and store each slot.
    for dy in range(wh):
        for dx in range(ww):
            i = dy * ww + dx
            o_ref[:, i, :, :] = _out(win_slice(dy, dx)).astype(o_ref.dtype)


def _choose_row_tile(h_out, per_row_bytes, target_bytes):
    """Row tile: multiple of 8 (BlockSpec sublane rule) or the full Hout."""
    if h_out <= 8 or h_out * per_row_bytes <= target_bytes:
        return h_out
    rows = int(target_bytes // per_row_bytes) // 8 * 8
    rows = max(8, rows)
    return h_out if rows >= h_out else rows


def extract_tensor_patches(x, window_size, stride=1, padding=0, eps=1e-6,
                           conv_layout=False):
    """JAX/Pallas equivalent of ExtractTensorPatches.forward.

    x: (B, C, H, W) -> (B, N, C, wh, ww) with N = Hout * Wout
    (or (B, C, wh, ww, N) when conv_layout=True, skipping the final permute).
    """
    wh, ww = _pair(window_size)
    sh, sw = _pair(stride)
    ph, pw = _pair(padding)

    B, C, H, W = x.shape
    Hp, Wp = H + 2 * ph, W + 2 * pw
    Hout = (Hp - wh) // sh + 1
    Wout = (Wp - ww) // sw + 1
    assert Hout > 0 and Wout > 0, "window larger than the (padded) input"

    BC = B * C
    itemsize = jnp.dtype(x.dtype).itemsize

    # --- tiling: ~<=1 MiB output tile, a few MiB of resident input per step ---
    OUT_TILE_TARGET = 1 << 20
    IN_TILE_TARGET = 4 << 20

    per_row_bytes = wh * ww * Wout * itemsize
    tr = _choose_row_tile(Hout, per_row_bytes, OUT_TILE_TARGET)
    n_rtiles = -(-Hout // tr)

    plane_in_bytes = H * W * itemsize
    out_tile_plane_bytes = wh * ww * tr * Wout * itemsize
    pblk = 1
    for d in range(1, BC + 1):            # largest divisor of B*C that fits budget
        if (BC % d == 0
                and d * out_tile_plane_bytes <= OUT_TILE_TARGET
                and d * plane_in_bytes <= IN_TILE_TARGET):
            pblk = d
    n_pblocks = BC // pblk

    # Padded plane lives in VMEM scratch; over-padded so slices for a ragged
    # last row tile stay in-bounds (the extra output rows are discarded by the
    # writeback).  Skipped entirely when there is no padding and no ragged tile.
    use_scratch = (ph > 0) or (pw > 0) or (n_rtiles * tr != Hout)
    Hs = max(Hp, (n_rtiles * tr - 1) * sh + wh)
    Ws = max(Wp, (Wout - 1) * sw + ww)
    scratch_shapes = [pltpu.VMEM((pblk, Hs, Ws), x.dtype)] if use_scratch else []

    xr = x.reshape(BC, H, W)              # free reshape, no data movement

    kernel = functools.partial(
        _extract_patches_kernel,
        window_size=(wh, ww),
        stride=(sh, sw),
        padding=(ph, pw),
        row_tile=tr,
        out_w=Wout,
        eps=eps,
        use_scratch=use_scratch,
    )

    conv_out = pl.pallas_call(
        kernel,
        out_shape=jax.ShapeDtypeStruct((BC, wh * ww, Hout, Wout), x.dtype),
        grid_spec=pltpu.PrefetchScalarGridSpec(
            num_scalar_prefetch=0,
            grid=(n_pblocks, n_rtiles),
            in_specs=[
                # Same block index across the row-tile axis -> input resident.
                pl.BlockSpec((pblk, H, W), lambda p, r: (p, 0, 0)),
            ],
            out_specs=pl.BlockSpec(
                (pblk, wh * ww, tr, Wout), lambda p, r: (p, 0, r, 0)
            ),
            scratch_shapes=scratch_shapes,
        ),
        compiler_params=pltpu.CompilerParams(
            # Plane axis shards across cores; row-tile axis carries the
            # fill-scratch-at-tile-0 dependency -> "arbitrary".
            dimension_semantics=("parallel", "arbitrary"),
            vmem_limit_bytes=32 * 1024 * 1024,
        ),
    )(xr)

    # (B*C, wh*ww, Hout, Wout) -> (B, C, wh, ww, N): pure metadata reshape.
    out = conv_out.reshape(B, C, wh, ww, Hout * Wout)
    if conv_layout:
        return out
    # NOTE: the module-mandated (B, N, C, wh, ww) layout requires a real HBM
    # permute of the wh*ww-inflated tensor; use conv_layout=True (or fuse the
    # permute into the consumer) to avoid it when possible.
    return jnp.transpose(out, (0, 4, 1, 2, 3))


def _reference_extract(x, window_size, stride, padding, eps=1e-6):
    """Pure-JAX reference (mirrors the PyTorch grouped-conv semantics)."""
    wh, ww = _pair(window_size)
    sh, sw = _pair(stride)
    ph, pw = _pair(padding)
    B, C, H, W = x.shape
    xp = jnp.pad(x, ((0, 0), (0, 0), (ph, ph), (pw, pw)))
    Hout = (H + 2 * ph - wh) // sh + 1
    Wout = (W + 2 * pw - ww) // sw + 1
    planes = []
    for i in range(wh * ww):
        dy, dx = i // ww, i % ww
        planes.append(
            xp[:, :, dy:dy + (Hout - 1) * sh + 1:sh,
                     dx:dx + (Wout - 1) * sw + 1:sw]
        )
    stack = jnp.stack(planes, axis=2)  # (B, C, wh*ww, Hout, Wout)
    out = stack + eps * jnp.sum(stack, axis=2, keepdims=True)
    out = out.reshape(B, C, wh, ww, Hout * Wout)
    return jnp.transpose(out, (0, 4, 1, 2, 3))


if __name__ == "__main__":
    key = jax.random.PRNGKey(0)
    B, C, H, W = 2, 4, 16, 16
    x = jax.random.normal(key, (B, C, H, W), dtype=jnp.float32)

    # Main config (module defaults): 3x3 window, stride 1, padding 0.
    out = extract_tensor_patches(x, 3, 1, 0)
    out = jax.block_until_ready(out)
    Hout = (H - 3) // 1 + 1
    assert out.shape == (B, Hout * Hout, C, 3, 3), out.shape
    ref = _reference_extract(x, 3, 1, 0)
    assert jnp.allclose(out, ref, atol=1e-5, rtol=1e-5)

    # Also exercise the in-kernel (VMEM) zero-padding path.
    out_p = jax.block_until_ready(extract_tensor_patches(x, 3, 1, 1))
    ref_p = _reference_extract(x, 3, 1, 1)
    assert out_p.shape == (B, H * W, C, 3, 3), out_p.shape
    assert jnp.allclose(out_p, ref_p, atol=1e-5, rtol=1e-5)

    print("KERNEL_OK")
</pallas_src>

<mosaic_0001>
module attributes {stable_mosaic.version = 11 : i64} {
  func.func @_extract_patches_kernel(%arg0: i32, %arg1: i32, %arg2: memref<8x16x16xf32, #tpu.memory_space<vmem>>, %arg3: memref<8x9x14x14xf32, #tpu.memory_space<vmem>>) attributes {dimension_semantics = [#tpu.dimension_semantics<parallel>, #tpu.dimension_semantics<arbitrary>], iteration_bounds = array<i64: 1, 1>, scalar_prefetch = 0 : i64, scratch_operands = 0 : i64, tpu.core_type = #tpu.core_type<tc>, window_params = [{transform_indices = @transform_0, window_bounds = array<i64: 8, 16, 16>}, {transform_indices = @transform_1, window_bounds = array<i64: 8, 9, 14, 14>}]} {
    %c14_i32 = arith.constant 14 : i32
    %0 = arith.muli %arg1, %c14_i32 : i32
    %1 = tpu.assume_multiple %0, 14 : i32
    %cst = arith.constant 0.000000e+00 : f32
    %2 = vector.broadcast %cst : f32 to vector<8x14x14xf32>
    %c0_i32 = arith.constant 0 : i32
    %3 = arith.addi %1, %c0_i32 : i32
    %c0 = arith.constant 0 : index
    %4 = arith.index_cast %3 : i32 to index
    %c0_0 = arith.constant 0 : index
    %5 = vector.load %arg2[%c0, %4, %c0_0] : memref<8x16x16xf32, #tpu.memory_space<vmem>>, vector<8x14x14xf32>
    %6 = arith.addf %2, %5 : vector<8x14x14xf32>
    %c0_i32_1 = arith.constant 0 : i32
    %7 = arith.addi %1, %c0_i32_1 : i32
    %c0_2 = arith.constant 0 : index
    %8 = arith.index_cast %7 : i32 to index
    %c1 = arith.constant 1 : index
    %9 = vector.load %arg2[%c0_2, %8, %c1] : memref<8x16x16xf32, #tpu.memory_space<vmem>>, vector<8x14x14xf32>
    %10 = arith.addf %6, %9 : vector<8x14x14xf32>
    %c0_i32_3 = arith.constant 0 : i32
    %11 = arith.addi %1, %c0_i32_3 : i32
    %c0_4 = arith.constant 0 : index
    %12 = arith.index_cast %11 : i32 to index
    %c2 = arith.constant 2 : index
    %13 = vector.load %arg2[%c0_4, %12, %c2] : memref<8x16x16xf32, #tpu.memory_space<vmem>>, vector<8x14x14xf32>
    %14 = arith.addf %10, %13 : vector<8x14x14xf32>
    %c1_i32 = arith.constant 1 : i32
    %15 = arith.addi %1, %c1_i32 : i32
    %c0_5 = arith.constant 0 : index
    %16 = arith.index_cast %15 : i32 to index
    %c0_6 = arith.constant 0 : index
    %17 = vector.load %arg2[%c0_5, %16, %c0_6] : memref<8x16x16xf32, #tpu.memory_space<vmem>>, vector<8x14x14xf32>
    %18 = arith.addf %14, %17 : vector<8x14x14xf32>
    %c1_i32_7 = arith.constant 1 : i32
    %19 = arith.addi %1, %c1_i32_7 : i32
    %c0_8 = arith.constant 0 : index
    %20 = arith.index_cast %19 : i32 to index
    %c1_9 = arith.constant 1 : index
    %21 = vector.load %arg2[%c0_8, %20, %c1_9] : memref<8x16x16xf32, #tpu.memory_space<vmem>>, vector<8x14x14xf32>
    %22 = arith.addf %18, %21 : vector<8x14x14xf32>
    %c1_i32_10 = arith.constant 1 : i32
    %23 = arith.addi %1, %c1_i32_10 : i32
    %c0_11 = arith.constant 0 : index
    %24 = arith.index_cast %23 : i32 to index
    %c2_12 = arith.constant 2 : index
    %25 = vector.load %arg2[%c0_11, %24, %c2_12] : memref<8x16x16xf32, #tpu.memory_space<vmem>>, vector<8x14x14xf32>
    %26 = arith.addf %22, %25 : vector<8x14x14xf32>
    %c2_i32 = arith.constant 2 : i32
    %27 = arith.addi %1, %c2_i32 : i32
    %c0_13 = arith.constant 0 : index
    %28 = arith.index_cast %27 : i32 to index
    %c0_14 = arith.constant 0 : index
    %29 = vector.load %arg2[%c0_13, %28, %c0_14] : memref<8x16x16xf32, #tpu.memory_space<vmem>>, vector<8x14x14xf32>
    %30 = arith.addf %26, %29 : vector<8x14x14xf32>
    %c2_i32_15 = arith.constant 2 : i32
    %31 = arith.addi %1, %c2_i32_15 : i32
    %c0_16 = arith.constant 0 : index
    %32 = arith.index_cast %31 : i32 to index
    %c1_17 = arith.constant 1 : index
    %33 = vector.load %arg2[%c0_16, %32, %c1_17] : memref<8x16x16xf32, #tpu.memory_space<vmem>>, vector<8x14x14xf32>
    %34 = arith.addf %30, %33 : vector<8x14x14xf32>
    %c2_i32_18 = arith.constant 2 : i32
    %35 = arith.addi %1, %c2_i32_18 : i32
    %c0_19 = arith.constant 0 : index
    %36 = arith.index_cast %35 : i32 to index
    %c2_20 = arith.constant 2 : index
    %37 = vector.load %arg2[%c0_19, %36, %c2_20] : memref<8x16x16xf32, #tpu.memory_space<vmem>>, vector<8x14x14xf32>
    %38 = arith.addf %34, %37 : vector<8x14x14xf32>
    %cst_21 = arith.constant 9.99999997E-7 : f32
    %39 = vector.broadcast %cst_21 : f32 to vector<8x14x14xf32>
    %40 = arith.mulf %39, %38 : vector<8x14x14xf32>
    %c0_i32_22 = arith.constant 0 : i32
    %41 = arith.addi %1, %c0_i32_22 : i32
    %c0_23 = arith.constant 0 : index
    %42 = arith.index_cast %41 : i32 to index
    %c0_24 = arith.constant 0 : index
    %43 = vector.load %arg2[%c0_23, %42, %c0_24] : memref<8x16x16xf32, #tpu.memory_space<vmem>>, vector<8x14x14xf32>
    %44 = arith.addf %43, %40 : vector<8x14x14xf32>
    %c0_25 = arith.constant 0 : index
    %c0_26 = arith.constant 0 : index
    %c0_27 = arith.constant 0 : index
    %c0_28 = arith.constant 0 : index
    %45 = vector.load %arg3[%c0_25, %c0_26, %c0_27, %c0_28] : memref<8x9x14x14xf32, #tpu.memory_space<vmem>>, vector<8x1x14x14xf32>
    %46 = vector.shape_cast %45 : vector<8x1x14x14xf32> to vector<8x14x14xf32>
    %47 = vector.shape_cast %44 : vector<8x14x14xf32> to vector<8x1x14x14xf32>
    tpu.vector_store %arg3[%c0_25, %c0_26, %c0_27, %c0_28], %47 {strides = array<i32>} : memref<8x9x14x14xf32, #tpu.memory_space<vmem>>, vector<8x1x14x14xf32>,
    %c0_i32_29 = arith.constant 0 : i32
    %48 = arith.addi %1, %c0_i32_29 : i32
    %c0_30 = arith.constant 0 : index
    %49 = arith.index_cast %48 : i32 to index
    %c1_31 = arith.constant 1 : index
    %50 = vector.load %arg2[%c0_30, %49, %c1_31] : memref<8x16x16xf32, #tpu.memory_space<vmem>>, vector<8x14x14xf32>
    %51 = arith.addf %50, %40 : vector<8x14x14xf32>
    %c0_32 = arith.constant 0 : index
    %c1_33 = arith.constant 1 : index
    %c0_34 = arith.constant 0 : index
    %c0_35 = arith.constant 0 : index
    %52 = vector.load %arg3[%c0_32, %c1_33, %c0_34, %c0_35] : memref<8x9x14x14xf32, #tpu.memory_space<vmem>>, vector<8x1x14x14xf32>
    %53 = vector.shape_cast %52 : vector<8x1x14x14xf32> to vector<8x14x14xf32>
    %54 = vector.shape_cast %51 : vector<8x14x14xf32> to vector<8x1x14x14xf32>
    tpu.vector_store %arg3[%c0_32, %c1_33, %c0_34, %c0_35], %54 {strides = array<i32>} : memref<8x9x14x14xf32, #tpu.memory_space<vmem>>, vector<8x1x14x14xf32>,
    %c0_i32_36 = arith.constant 0 : i32
    %55 = arith.addi %1, %c0_i32_36 : i32
    %c0_37 = arith.constant 0 : index
    %56 = arith.index_cast %55 : i32 to index
    %c2_38 = arith.constant 2 : index
    %57 = vector.load %arg2[%c0_37, %56, %c2_38] : memref<8x16x16xf32, #tpu.memory_space<vmem>>, vector<8x14x14xf32>
    %58 = arith.addf %57, %40 : vector<8x14x14xf32>
    %c0_39 = arith.constant 0 : index
    %c2_40 = arith.constant 2 : index
    %c0_41 = arith.constant 0 : index
    %c0_42 = arith.constant 0 : index
    %59 = vector.load %arg3[%c0_39, %c2_40, %c0_41, %c0_42] : memref<8x9x14x14xf32, #tpu.memory_space<vmem>>, vector<8x1x14x14xf32>
    %60 = vector.shape_cast %59 : vector<8x1x14x14xf32> to vector<8x14x14xf32>
    %61 = vector.shape_cast %58 : vector<8x14x14xf32> to vector<8x1x14x14xf32>
    tpu.vector_store %arg3[%c0_39, %c2_40, %c0_41, %c0_42], %61 {strides = array<i32>} : memref<8x9x14x14xf32, #tpu.memory_space<vmem>>, vector<8x1x14x14xf32>,
    %c1_i32_43 = arith.constant 1 : i32
    %62 = arith.addi %1, %c1_i32_43 : i32
    %c0_44 = arith.constant 0 : index
    %63 = arith.index_cast %62 : i32 to index
    %c0_45 = arith.constant 0 : index
    %64 = vector.load %arg2[%c0_44, %63, %c0_45] : memref<8x16x16xf32, #tpu.memory_space<vmem>>, vector<8x14x14xf32>
    %65 = arith.addf %64, %40 : vector<8x14x14xf32>
    %c0_46 = arith.constant 0 : index
    %c3 = arith.constant 3 : index
    %c0_47 = arith.constant 0 : index
    %c0_48 = arith.constant 0 : index
    %66 = vector.load %arg3[%c0_46, %c3, %c0_47, %c0_48] : memref<8x9x14x14xf32, #tpu.memory_space<vmem>>, vector<8x1x14x14xf32>
    %67 = vector.shape_cast %66 : vector<8x1x14x14xf32> to vector<8x14x14xf32>
    %68 = vector.shape_cast %65 : vector<8x14x14xf32> to vector<8x1x14x14xf32>
    tpu.vector_store %arg3[%c0_46, %c3, %c0_47, %c0_48], %68 {strides = array<i32>} : memref<8x9x14x14xf32, #tpu.memory_space<vmem>>, vector<8x1x14x14xf32>,
    %c1_i32_49 = arith.constant 1 : i32
    %69 = arith.addi %1, %c1_i32_49 : i32
    %c0_50 = arith.constant 0 : index
    %70 = arith.index_cast %69 : i32 to index
    %c1_51 = arith.constant 1 : index
    %71 = vector.load %arg2[%c0_50, %70, %c1_51] : memref<8x16x16xf32, #tpu.memory_space<vmem>>, vector<8x14x14xf32>
    %72 = arith.addf %71, %40 : vector<8x14x14xf32>
    %c0_52 = arith.constant 0 : index
    %c4 = arith.constant 4 : index
    %c0_53 = arith.constant 0 : index
    %c0_54 = arith.constant 0 : index
    %73 = vector.load %arg3[%c0_52, %c4, %c0_53, %c0_54] : memref<8x9x14x14xf32, #tpu.memory_space<vmem>>, vector<8x1x14x14xf32>
    %74 = vector.shape_cast %73 : vector<8x1x14x14xf32> to vector<8x14x14xf32>
    %75 = vector.shape_cast %72 : vector<8x14x14xf32> to vector<8x1x14x14xf32>
    tpu.vector_store %arg3[%c0_52, %c4, %c0_53, %c0_54], %75 {strides = array<i32>} : memref<8x9x14x14xf32, #tpu.memory_space<vmem>>, vector<8x1x14x14xf32>,
    %c1_i32_55 = arith.constant 1 : i32
    %76 = arith.addi %1, %c1_i32_55 : i32
    %c0_56 = arith.constant 0 : index
    %77 = arith.index_cast %76 : i32 to index
    %c2_57 = arith.constant 2 : index
    %78 = vector.load %arg2[%c0_56, %77, %c2_57] : memref<8x16x16xf32, #tpu.memory_space<vmem>>, vector<8x14x14xf32>
    %79 = arith.addf %78, %40 : vector<8x14x14xf32>
    %c0_58 = arith.constant 0 : index
    %c5 = arith.constant 5 : index
    %c0_59 = arith.constant 0 : index
    %c0_60 = arith.constant 0 : index
    %80 = vector.load %arg3[%c0_58, %c5, %c0_59, %c0_60] : memref<8x9x14x14xf32, #tpu.memory_space<vmem>>, vector<8x1x14x14xf32>
    %81 = vector.shape_cast %80 : vector<8x1x14x14xf32> to vector<8x14x14xf32>
    %82 = vector.shape_cast %79 : vector<8x14x14xf32> to vector<8x1x14x14xf32>
    tpu.vector_store %arg3[%c0_58, %c5, %c0_59, %c0_60], %82 {strides = array<i32>} : memref<8x9x14x14xf32, #tpu.memory_space<vmem>>, vector<8x1x14x14xf32>,
    %c2_i32_61 = arith.constant 2 : i32
    %83 = arith.addi %1, %c2_i32_61 : i32
    %c0_62 = arith.constant 0 : index
    %84 = arith.index_cast %83 : i32 to index
    %c0_63 = arith.constant 0 : index
    %85 = vector.load %arg2[%c0_62, %84, %c0_63] : memref<8x16x16xf32, #tpu.memory_space<vmem>>, vector<8x14x14xf32>
    %86 = arith.addf %85, %40 : vector<8x14x14xf32>
    %c0_64 = arith.constant 0 : index
    %c6 = arith.constant 6 : index
    %c0_65 = arith.constant 0 : index
    %c0_66 = arith.constant 0 : index
    %87 = vector.load %arg3[%c0_64, %c6, %c0_65, %c0_66] : memref<8x9x14x14xf32, #tpu.memory_space<vmem>>, vector<8x1x14x14xf32>
    %88 = vector.shape_cast %87 : vector<8x1x14x14xf32> to vector<8x14x14xf32>
    %89 = vector.shape_cast %86 : vector<8x14x14xf32> to vector<8x1x14x14xf32>
    tpu.vector_store %arg3[%c0_64, %c6, %c0_65, %c0_66], %89 {strides = array<i32>} : memref<8x9x14x14xf32, #tpu.memory_space<vmem>>, vector<8x1x14x14xf32>,
    %c2_i32_67 = arith.constant 2 : i32
    %90 = arith.addi %1, %c2_i32_67 : i32
    %c0_68 = arith.constant 0 : index
    %91 = arith.index_cast %90 : i32 to index
    %c1_69 = arith.constant 1 : index
    %92 = vector.load %arg2[%c0_68, %91, %c1_69] : memref<8x16x16xf32, #tpu.memory_space<vmem>>, vector<8x14x14xf32>
    %93 = arith.addf %92, %40 : vector<8x14x14xf32>
    %c0_70 = arith.constant 0 : index
    %c7 = arith.constant 7 : index
    %c0_71 = arith.constant 0 : index
    %c0_72 = arith.constant 0 : index
    %94 = vector.load %arg3[%c0_70, %c7, %c0_71, %c0_72] : memref<8x9x14x14xf32, #tpu.memory_space<vmem>>, vector<8x1x14x14xf32>
    %95 = vector.shape_cast %94 : vector<8x1x14x14xf32> to vector<8x14x14xf32>
    %96 = vector.shape_cast %93 : vector<8x14x14xf32> to vector<8x1x14x14xf32>
    tpu.vector_store %arg3[%c0_70, %c7, %c0_71, %c0_72], %96 {strides = array<i32>} : memref<8x9x14x14xf32, #tpu.memory_space<vmem>>, vector<8x1x14x14xf32>,
    %c2_i32_73 = arith.constant 2 : i32
    %97 = arith.addi %1, %c2_i32_73 : i32
    %c0_74 = arith.constant 0 : index
    %98 = arith.index_cast %97 : i32 to index
    %c2_75 = arith.constant 2 : index
    %99 = vector.load %arg2[%c0_74, %98, %c2_75] : memref<8x16x16xf32, #tpu.memory_space<vmem>>, vector<8x14x14xf32>
    %100 = arith.addf %99, %40 : vector<8x14x14xf32>
    %c0_76 = arith.constant 0 : index
    %c8 = arith.constant 8 : index
    %c0_77 = arith.constant 0 : index
    %c0_78 = arith.constant 0 : index
    %101 = vector.load %arg3[%c0_76, %c8, %c0_77, %c0_78] : memref<8x9x14x14xf32, #tpu.memory_space<vmem>>, vector<8x1x14x14xf32>
    %102 = vector.shape_cast %101 : vector<8x1x14x14xf32> to vector<8x14x14xf32>
    %103 = vector.shape_cast %100 : vector<8x14x14xf32> to vector<8x1x14x14xf32>
    tpu.vector_store %arg3[%c0_76, %c8, %c0_77, %c0_78], %103 {strides = array<i32>} : memref<8x9x14x14xf32, #tpu.memory_space<vmem>>, vector<8x1x14x14xf32>,
    return
  }
  func.func @transform_0(%arg0: i32, %arg1: i32) -> (i32, i32, i32) {
    %c0_i32 = arith.constant 0 : i32
    %c0_i32_0 = arith.constant 0 : i32
    %c0_i32_1 = arith.constant 0 : i32
    return %arg0, %c0_i32, %c0_i32_0 : i32, i32, i32
  }
  func.func @transform_1(%arg0: i32, %arg1: i32) -> (i32, i32, i32, i32) {
    %c0_i32 = arith.constant 0 : i32
    %c0_i32_0 = arith.constant 0 : i32
    %c0_i32_1 = arith.constant 0 : i32
    return %arg0, %c0_i32, %arg1, %c0_i32_0 : i32, i32, i32, i32
  }
}

</mosaic_0001>

<llo_original>
// kernel: tpu_custom_call.1
$region0: #{tpu_custom_call.1}
  #allocation0 [shape = 'u32[]', space=smem, size = 0x4, offset = 0x4, fixed_abs, tag = 'smem constant byte address 0x4 - core index']
  #allocation1 [shape = 'u32[144,128]{1,0:T(1,128)}', space=vmem, size = 0x12000, scoped, tag = 'internal scratch']
  %s0 = inlined_call_operand.hbm [shape: f32[8,16,16], index: 0, kind: input, shape index: {}]
  %s1 = inlined_call_operand.vmem [shape: f32[8,9,14,14], index: 1, kind: output, shape index: {}]
  %s2 = sld [smem:[#allocation0]]
  $region18: #{tpu_custom_call.1} parent=0
    _
  %s4 = ssub.s32 1, %s2
  %s5 = scalar_select 0, %s4, %s2
  $region1: #{tpu_custom_call.1} parent=0
    #allocation2 [shape = 'u8[65536]{0}', space=vmem, size = 0x10000, scoped, tag = 'input window, operand 0, single buffered']
    #allocation3 [shape = 's32[1]{0}', space=sflag, size = 0x4, scoped, tag = 'scoped memory for tpu_custom_call.1']
    %6 = vsyncpa [#allocation3], 0
    // Predicated region
    $region2: #{tpu_custom_call.1} parent=1 // pred_check
      _
    $region3: #{tpu_custom_call.1} parent=1 // pred_check_branch
      %8 = sbr.rel (0) target = $region5
    $region4: #{tpu_custom_call.1} parent=1 // pred_region
      %s10 = ssub.s32 2048, 2048
      %11 = vsyncadd [#allocation3], %s10
      %s12 = sshll.u32 [#allocation2], 4
      %s13 = int_to_ptr.vmem [resolvable:$true] %s12
      %18 = dma.hbm_to_vmem [thread:$0]  %s0, 2048, %s13, [#allocation3], 128, 128, 8
    $region5: #{tpu_custom_call.1} parent=1 // pred_fallthru
      _
    // Predicated region
    $region6: #{tpu_custom_call.1} parent=1 // pred_check
      _
    $region7: #{tpu_custom_call.1} parent=1 // pred_check_branch
      %20 = sbr.rel (0) target = $region9
    $region8: #{tpu_custom_call.1} parent=1 // pred_region
      %21 = dma.done [#allocation3], 2048
    $region9: #{tpu_custom_call.1} parent=1 // pred_fallthru
      _
    %s22 = smul.u32 0, 14
    %s23 = scalar_lea.vmem [#allocation2], %s22
    %v24 = vld [vmem:[%s23] sm:$0xff]
    %v25 = vld [vmem:[%s23 + $0x8] sm:$0x3f]
    %v26 = vld [vmem:[%s23 + $0x10] sm:$0xff]
    %v27 = vld [vmem:[%s23 + $0x18] sm:$0x3f]
    %v28 = vld [vmem:[%s23 + $0x20] sm:$0xff]
    %v29 = vld [vmem:[%s23 + $0x28] sm:$0x3f]
    %v30 = vld [vmem:[%s23 + $0x30] sm:$0xff]
    %v31 = vld [vmem:[%s23 + $0x38] sm:$0x3f]
    %v32 = vld [vmem:[%s23 + $0x40] sm:$0xff]
    %v33 = vld [vmem:[%s23 + $0x48] sm:$0x3f]
    %v34 = vld [vmem:[%s23 + $0x50] sm:$0xff]
    %v35 = vld [vmem:[%s23 + $0x58] sm:$0x3f]
    %v36 = vld [vmem:[%s23 + $0x60] sm:$0xff]
    %v37 = vld [vmem:[%s23 + $0x68] sm:$0x3f]
    %v38 = vld [vmem:[%s23 + $0x70] sm:$0xff]
    %v39 = vld [vmem:[%s23 + $0x78] sm:$0x3f]
    %v40 = vadd.f32 %v24, 0.0
    %v41 = vadd.f32 %v25, 0.0
    %v42 = vadd.f32 %v26, 0.0
    %v43 = vadd.f32 %v27, 0.0
    %v44 = vadd.f32 %v28, 0.0
    %v45 = vadd.f32 %v29, 0.0
    %v46 = vadd.f32 %v30, 0.0
    %v47 = vadd.f32 %v31, 0.0
    %v48 = vadd.f32 %v32, 0.0
    %v49 = vadd.f32 %v33, 0.0
    %v50 = vadd.f32 %v34, 0.0
    %v51 = vadd.f32 %v35, 0.0
    %v52 = vadd.f32 %v36, 0.0
    %v53 = vadd.f32 %v37, 0.0
    %v54 = vadd.f32 %v38, 0.0
    %v55 = vadd.f32 %v39, 0.0
    %72 = vrot.lane.b32.xlu0 %v24, 127
    %v73 = vpop.permute.xlu0 %72
    %74 = vrot.lane.b32.xlu0 %v25, 127
    %v75 = vpop.permute.xlu0 %74
    %76 = vrot.lane.b32.xlu0 %v26, 127
    %v77 = vpop.permute.xlu0 %76
    %78 = vrot.lane.b32.xlu0 %v27, 127
    %v79 = vpop.permute.xlu0 %78
    %80 = vrot.lane.b32.xlu0 %v28, 127
    %v81 = vpop.permute.xlu0 %80
    %82 = vrot.lane.b32.xlu0 %v29, 127
    %v83 = vpop.permute.xlu0 %82
    %84 = vrot.lane.b32.xlu0 %v30, 127
    %v85 = vpop.permute.xlu0 %84
    %86 = vrot.lane.b32.xlu0 %v31, 127
    %v87 = vpop.permute.xlu0 %86
    %88 = vrot.lane.b32.xlu0 %v32, 127
    %v89 = vpop.permute.xlu0 %88
    %90 = vrot.lane.b32.xlu0 %v33, 127
    %v91 = vpop.permute.xlu0 %90
    %92 = vrot.lane.b32.xlu0 %v34, 127
    %v93 = vpop.permute.xlu0 %92
    %94 = vrot.lane.b32.xlu0 %v35, 127
    %v95 = vpop.permute.xlu0 %94
    %96 = vrot.lane.b32.xlu0 %v36, 127
    %v97 = vpop.permute.xlu0 %96
    %98 = vrot.lane.b32.xlu0 %v37, 127
    %v99 = vpop.permute.xlu0 %98
    %100 = vrot.lane.b32.xlu0 %v38, 127
    %v101 = vpop.permute.xlu0 %100
    %102 = vrot.lane.b32.xlu0 %v39, 127
    %v103 = vpop.permute.xlu0 %102
    %v120 = vadd.f32 %v40, %v73
    %v121 = vadd.f32 %v41, %v75
    %v122 = vadd.f32 %v42, %v77
    %v123 = vadd.f32 %v43, %v79
    %v124 = vadd.f32 %v44, %v81
    %v125 = vadd.f32 %v45, %v83
    %v126 = vadd.f32 %v46, %v85
    %v127 = vadd.f32 %v47, %v87
    %v128 = vadd.f32 %v48, %v89
    %v129 = vadd.f32 %v49, %v91
    %v130 = vadd.f32 %v50, %v93
    %v131 = vadd.f32 %v51, %v95
    %v132 = vadd.f32 %v52, %v97
    %v133 = vadd.f32 %v53, %v99
    %v134 = vadd.f32 %v54, %v101
    %v135 = vadd.f32 %v55, %v103
    %136 = vrot.lane.b32.xlu0 %v24, 126
    %v137 = vpop.permute.xlu0 %136
    %138 = vrot.lane.b32.xlu0 %v25, 126
    %v139 = vpop.permute.xlu0 %138
    %140 = vrot.lane.b32.xlu0 %v26, 126
    %v141 = vpop.permute.xlu0 %140
    %142 = vrot.lane.b32.xlu0 %v27, 126
    %v143 = vpop.permute.xlu0 %142
    %144 = vrot.lane.b32.xlu0 %v28, 126
    %v145 = vpop.permute.xlu0 %144
    %146 = vrot.lane.b32.xlu0 %v29, 126
    %v147 = vpop.permute.xlu0 %146
    %148 = vrot.lane.b32.xlu0 %v30, 126
    %v149 = vpop.permute.xlu0 %148
    %150 = vrot.lane.b32.xlu0 %v31, 126
    %v151 = vpop.permute.xlu0 %150
    %152 = vrot.lane.b32.xlu0 %v32, 126
    %v153 = vpop.permute.xlu0 %152
    %154 = vrot.lane.b32.xlu0 %v33, 126
    %v155 = vpop.permute.xlu0 %154
    %156 = vrot.lane.b32.xlu0 %v34, 126
    %v157 = vpop.permute.xlu0 %156
    %158 = vrot.lane.b32.xlu0 %v35, 126
    %v159 = vpop.permute.xlu0 %158
    %160 = vrot.lane.b32.xlu0 %v36, 126
    %v161 = vpop.permute.xlu0 %160
    %162 = vrot.lane.b32.xlu0 %v37, 126
    %v163 = vpop.permute.xlu0 %162
    %164 = vrot.lane.b32.xlu0 %v38, 126
    %v165 = vpop.permute.xlu0 %164
    %166 = vrot.lane.b32.xlu0 %v39, 126
    %v167 = vpop.permute.xlu0 %166
    %v184 = vadd.f32 %v120, %v137
    %v185 = vadd.f32 %v121, %v139
    %v186 = vadd.f32 %v122, %v141
    %v187 = vadd.f32 %v123, %v143
    %v188 = vadd.f32 %v124, %v145
    %v189 = vadd.f32 %v125, %v147
    %v190 = vadd.f32 %v126, %v149
    %v191 = vadd.f32 %v127, %v151
    %v192 = vadd.f32 %v128, %v153
    %v193 = vadd.f32 %v129, %v155
    %v194 = vadd.f32 %v130, %v157
    %v195 = vadd.f32 %v131, %v159
    %v196 = vadd.f32 %v132, %v161
    %v197 = vadd.f32 %v133, %v163
    %v198 = vadd.f32 %v134, %v165
    %v199 = vadd.f32 %v135, %v167
    %s200 = sadd.s32 %s22, 1
    %s201 = scalar_lea.vmem [#allocation2], %s200
    %v202 = vld [vmem:[%s201] sm:$0xff]
    %v203 = vld [vmem:[%s201 + $0x8] sm:$0x3f]
    %v204 = vld [vmem:[%s201 + $0x10] sm:$0xff]
    %v205 = vld [vmem:[%s201 + $0x18] sm:$0x3f]
    %v206 = vld [vmem:[%s201 + $0x20] sm:$0xff]
    %v207 = vld [vmem:[%s201 + $0x28] sm:$0x3f]
    %v208 = vld [vmem:[%s201 + $0x30] sm:$0xff]
    %v209 = vld [vmem:[%s201 + $0x38] sm:$0x3f]
    %v210 = vld [vmem:[%s201 + $0x40] sm:$0xff]
    %v211 = vld [vmem:[%s201 + $0x48] sm:$0x3f]
    %v212 = vld [vmem:[%s201 + $0x50] sm:$0xff]
    %v213 = vld [vmem:[%s201 + $0x58] sm:$0x3f]
    %v214 = vld [vmem:[%s201 + $0x60] sm:$0xff]
    %v215 = vld [vmem:[%s201 + $0x68] sm:$0x3f]
    %v216 = vld [vmem:[%s201 + $0x70] sm:$0xff]
    %v217 = vld [vmem:[%s201 + $0x78] sm:$0x3f]
    %v218 = vadd.f32 %v184, %v202
    %v219 = vadd.f32 %v185, %v203
    %v220 = vadd.f32 %v186, %v204
    %v221 = vadd.f32 %v187, %v205
    %v222 = vadd.f32 %v188, %v206
    %v223 = vadd.f32 %v189, %v207
    %v224 = vadd.f32 %v190, %v208
    %v225 = vadd.f32 %v191, %v209
    %v226 = vadd.f32 %v192, %v210
    %v227 = vadd.f32 %v193, %v211
    %v228 = vadd.f32 %v194, %v212
    %v229 = vadd.f32 %v195, %v213
    %v230 = vadd.f32 %v196, %v214
    %v231 = vadd.f32 %v197, %v215
    %v232 = vadd.f32 %v198, %v216
    %v233 = vadd.f32 %v199, %v217
    %250 = vrot.lane.b32.xlu0 %v202, 127
    %v251 = vpop.permute.xlu0 %250
    %252 = vrot.lane.b32.xlu0 %v203, 127
    %v253 = vpop.permute.xlu0 %252
    %254 = vrot.lane.b32.xlu0 %v204, 127
    %v255 = vpop.permute.xlu0 %254
    %256 = vrot.lane.b32.xlu0 %v205, 127
    %v257 = vpop.permute.xlu0 %256
    %258 = vrot.lane.b32.xlu0 %v206, 127
    %v259 = vpop.permute.xlu0 %258
    %260 = vrot.lane.b32.xlu0 %v207, 127
    %v261 = vpop.permute.xlu0 %260
    %262 = vrot.lane.b32.xlu0 %v208, 127
    %v263 = vpop.permute.xlu0 %262
    %264 = vrot.lane.b32.xlu0 %v209, 127
    %v265 = vpop.permute.xlu0 %264
    %266 = vrot.lane.b32.xlu0 %v210, 127
    %v267 = vpop.permute.xlu0 %266
    %268 = vrot.lane.b32.xlu0 %v211, 127
    %v269 = vpop.permute.xlu0 %268
    %270 = vrot.lane.b32.xlu0 %v212, 127
    %v271 = vpop.permute.xlu0 %270
    %272 = vrot.lane.b32.xlu0 %v213, 127
    %v273 = vpop.permute.xlu0 %272
    %274 = vrot.lane.b32.xlu0 %v214, 127
    %v275 = vpop.permute.xlu0 %274
    %276 = vrot.lane.b32.xlu0 %v215, 127
    %v277 = vpop.permute.xlu0 %276
    %278 = vrot.lane.b32.xlu0 %v216, 127
    %v279 = vpop.permute.xlu0 %278
    %280 = vrot.lane.b32.xlu0 %v217, 127
    %v281 = vpop.permute.xlu0 %280
    %v298 = vadd.f32 %v218, %v251
    %v299 = vadd.f32 %v219, %v253
    %v300 = vadd.f32 %v220, %v255
    %v301 = vadd.f32 %v221, %v257
    %v302 = vadd.f32 %v222, %v259
    %v303 = vadd.f32 %v223, %v261
    %v304 = vadd.f32 %v224, %v263
    %v305 = vadd.f32 %v225, %v265
    %v306 = vadd.f32 %v226, %v267
    %v307 = vadd.f32 %v227, %v269
    %v308 = vadd.f32 %v228, %v271
    %v309 = vadd.f32 %v229, %v273
    %v310 = vadd.f32 %v230, %v275
    %v311 = vadd.f32 %v231, %v277
    %v312 = vadd.f32 %v232, %v279
    %v313 = vadd.f32 %v233, %v281
    %314 = vrot.lane.b32.xlu0 %v202, 126
    %v315 = vpop.permute.xlu0 %314
    %316 = vrot.lane.b32.xlu0 %v203, 126
    %v317 = vpop.permute.xlu0 %316
    %318 = vrot.lane.b32.xlu0 %v204, 126
    %v319 = vpop.permute.xlu0 %318
    %320 = vrot.lane.b32.xlu0 %v205, 126
    %v321 = vpop.permute.xlu0 %320
    %322 = vrot.lane.b32.xlu0 %v206, 126
    %v323 = vpop.permute.xlu0 %322
    %324 = vrot.lane.b32.xlu0 %v207, 126
    %v325 = vpop.permute.xlu0 %324
    %326 = vrot.lane.b32.xlu0 %v208, 126
    %v327 = vpop.permute.xlu0 %326
    %328 = vrot.lane.b32.xlu0 %v209, 126
    %v329 = vpop.permute.xlu0 %328
    %330 = vrot.lane.b32.xlu0 %v210, 126
    %v331 = vpop.permute.xlu0 %330
    %332 = vrot.lane.b32.xlu0 %v211, 126
    %v333 = vpop.permute.xlu0 %332
    %334 = vrot.lane.b32.xlu0 %v212, 126
    %v335 = vpop.permute.xlu0 %334
    %336 = vrot.lane.b32.xlu0 %v213, 126
    %v337 = vpop.permute.xlu0 %336
    %338 = vrot.lane.b32.xlu0 %v214, 126
    %v339 = vpop.permute.xlu0 %338
    %340 = vrot.lane.b32.xlu0 %v215, 126
    %v341 = vpop.permute.xlu0 %340
    %342 = vrot.lane.b32.xlu0 %v216, 126
    %v343 = vpop.permute.xlu0 %342
    %344 = vrot.lane.b32.xlu0 %v217, 126
    %v345 = vpop.permute.xlu0 %344
    %v362 = vadd.f32 %v298, %v315
    %v363 = vadd.f32 %v299, %v317
    %v364 = vadd.f32 %v300, %v319
    %v365 = vadd.f32 %v301, %v321
    %v366 = vadd.f32 %v302, %v323
    %v367 = vadd.f32 %v303, %v325
    %v368 = vadd.f32 %v304, %v327
    %v369 = vadd.f32 %v305, %v329
    %v370 = vadd.f32 %v306, %v331
    %v371 = vadd.f32 %v307, %v333
    %v372 = vadd.f32 %v308, %v335
    %v373 = vadd.f32 %v309, %v337
    %v374 = vadd.f32 %v310, %v339
    %v375 = vadd.f32 %v311, %v341
    %v376 = vadd.f32 %v312, %v343
    %v377 = vadd.f32 %v313, %v345
    %s378 = sadd.s32 %s22, 2
    %s379 = scalar_lea.vmem [#allocation2], %s378
    %v380 = vld [vmem:[%s379] sm:$0xff]
    %v381 = vld [vmem:[%s379 + $0x8] sm:$0x3f]
    %v382 = vld [vmem:[%s379 + $0x10] sm:$0xff]
    %v383 = vld [vmem:[%s379 + $0x18] sm:$0x3f]
    %v384 = vld [vmem:[%s379 + $0x20] sm:$0xff]
    %v385 = vld [vmem:[%s379 + $0x28] sm:$0x3f]
    %v386 = vld [vmem:[%s379 + $0x30] sm:$0xff]
    %v387 = vld [vmem:[%s379 + $0x38] sm:$0x3f]
    %v388 = vld [vmem:[%s379 + $0x40] sm:$0xff]
    %v389 = vld [vmem:[%s379 + $0x48] sm:$0x3f]
    %v390 = vld [vmem:[%s379 + $0x50] sm:$0xff]
    %v391 = vld [vmem:[%s379 + $0x58] sm:$0x3f]
    %v392 = vld [vmem:[%s379 + $0x60] sm:$0xff]
    %v393 = vld [vmem:[%s379 + $0x68] sm:$0x3f]
    %v394 = vld [vmem:[%s379 + $0x70] sm:$0xff]
    %v395 = vld [vmem:[%s379 + $0x78] sm:$0x3f]
    %v396 = vadd.f32 %v362, %v380
    %v397 = vadd.f32 %v363, %v381
    %v398 = vadd.f32 %v364, %v382
    %v399 = vadd.f32 %v365, %v383
    %v400 = vadd.f32 %v366, %v384
    %v401 = vadd.f32 %v367, %v385
    %v402 = vadd.f32 %v368, %v386
    %v403 = vadd.f32 %v369, %v387
    %v404 = vadd.f32 %v370, %v388
    %v405 = vadd.f32 %v371, %v389
    %v406 = vadd.f32 %v372, %v390
    %v407 = vadd.f32 %v373, %v391
    %v408 = vadd.f32 %v374, %v392
    %v409 = vadd.f32 %v375, %v393
    %v410 = vadd.f32 %v376, %v394
    %v411 = vadd.f32 %v377, %v395
    %428 = vrot.lane.b32.xlu0 %v380, 127
    %v429 = vpop.permute.xlu0 %428
    %430 = vrot.lane.b32.xlu0 %v381, 127
    %v431 = vpop.permute.xlu0 %430
    %432 = vrot.lane.b32.xlu0 %v382, 127
    %v433 = vpop.permute.xlu0 %432
    %434 = vrot.lane.b32.xlu0 %v383, 127
    %v435 = vpop.permute.xlu0 %434
    %436 = vrot.lane.b32.xlu0 %v384, 127
    %v437 = vpop.permute.xlu0 %436
    %438 = vrot.lane.b32.xlu0 %v385, 127
    %v439 = vpop.permute.xlu0 %438
    %440 = vrot.lane.b32.xlu0 %v386, 127
    %v441 = vpop.permute.xlu0 %440
    %442 = vrot.lane.b32.xlu0 %v387, 127
    %v443 = vpop.permute.xlu0 %442
    %444 = vrot.lane.b32.xlu0 %v388, 127
    %v445 = vpop.permute.xlu0 %444
    %446 = vrot.lane.b32.xlu0 %v389, 127
    %v447 = vpop.permute.xlu0 %446
    %448 = vrot.lane.b32.xlu0 %v390, 127
    %v449 = vpop.permute.xlu0 %448
    %450 = vrot.lane.b32.xlu0 %v391, 127
    %v451 = vpop.permute.xlu0 %450
    %452 = vrot.lane.b32.xlu0 %v392, 127
    %v453 = vpop.permute.xlu0 %452
    %454 = vrot.lane.b32.xlu0 %v393, 127
    %v455 = vpop.permute.xlu0 %454
    %456 = vrot.lane.b32.xlu0 %v394, 127
    %v457 = vpop.permute.xlu0 %456
    %458 = vrot.lane.b32.xlu0 %v395, 127
    %v459 = vpop.permute.xlu0 %458
    %v476 = vadd.f32 %v396, %v429
    %v477 = vadd.f32 %v397, %v431
    %v478 = vadd.f32 %v398, %v433
    %v479 = vadd.f32 %v399, %v435
    %v480 = vadd.f32 %v400, %v437
    %v481 = vadd.f32 %v401, %v439
    %v482 = vadd.f32 %v402, %v441
    %v483 = vadd.f32 %v403, %v443
    %v484 = vadd.f32 %v404, %v445
    %v485 = vadd.f32 %v405, %v447
    %v486 = vadd.f32 %v406, %v449
    %v487 = vadd.f32 %v407, %v451
    %v488 = vadd.f32 %v408, %v453
    %v489 = vadd.f32 %v409, %v455
    %v490 = vadd.f32 %v410, %v457
    %v491 = vadd.f32 %v411, %v459
    %492 = vrot.lane.b32.xlu0 %v380, 126
    %v493 = vpop.permute.xlu0 %492
    %494 = vrot.lane.b32.xlu0 %v381, 126
    %v495 = vpop.permute.xlu0 %494
    %496 = vrot.lane.b32.xlu0 %v382, 126
    %v497 = vpop.permute.xlu0 %496
    %498 = vrot.lane.b32.xlu0 %v383, 126
    %v499 = vpop.permute.xlu0 %498
    %500 = vrot.lane.b32.xlu0 %v384, 126
    %v501 = vpop.permute.xlu0 %500
    %502 = vrot.lane.b32.xlu0 %v385, 126
    %v503 = vpop.permute.xlu0 %502
    %504 = vrot.lane.b32.xlu0 %v386, 126
    %v505 = vpop.permute.xlu0 %504
    %506 = vrot.lane.b32.xlu0 %v387, 126
    %v507 = vpop.permute.xlu0 %506
    %508 = vrot.lane.b32.xlu0 %v388, 126
    %v509 = vpop.permute.xlu0 %508
    %510 = vrot.lane.b32.xlu0 %v389, 126
    %v511 = vpop.permute.xlu0 %510
    %512 = vrot.lane.b32.xlu0 %v390, 126
    %v513 = vpop.permute.xlu0 %512
    %514 = vrot.lane.b32.xlu0 %v391, 126
    %v515 = vpop.permute.xlu0 %514
    %516 = vrot.lane.b32.xlu0 %v392, 126
    %v517 = vpop.permute.xlu0 %516
    %518 = vrot.lane.b32.xlu0 %v393, 126
    %v519 = vpop.permute.xlu0 %518
    %520 = vrot.lane.b32.xlu0 %v394, 126
    %v521 = vpop.permute.xlu0 %520
    %522 = vrot.lane.b32.xlu0 %v395, 126
    %v523 = vpop.permute.xlu0 %522
    %v540 = vadd.f32 %v476, %v493
    %v541 = vadd.f32 %v477, %v495
    %v542 = vadd.f32 %v478, %v497
    %v543 = vadd.f32 %v479, %v499
    %v544 = vadd.f32 %v480, %v501
    %v545 = vadd.f32 %v481, %v503
    %v546 = vadd.f32 %v482, %v505
    %v547 = vadd.f32 %v483, %v507
    %v548 = vadd.f32 %v484, %v509
    %v549 = vadd.f32 %v485, %v511
    %v550 = vadd.f32 %v486, %v513
    %v551 = vadd.f32 %v487, %v515
    %v552 = vadd.f32 %v488, %v517
    %v553 = vadd.f32 %v489, %v519
    %v554 = vadd.f32 %v490, %v521
    %v555 = vadd.f32 %v491, %v523
    %v556 = vmul.f32 %v540, 1e-06
    %v557 = vmul.f32 %v541, 1e-06
    %v558 = vmul.f32 %v542, 1e-06
    %v559 = vmul.f32 %v543, 1e-06
    %v560 = vmul.f32 %v544, 1e-06
    %v561 = vmul.f32 %v545, 1e-06
    %v562 = vmul.f32 %v546, 1e-06
    %v563 = vmul.f32 %v547, 1e-06
    %v564 = vmul.f32 %v548, 1e-06
    %v565 = vmul.f32 %v549, 1e-06
    %v566 = vmul.f32 %v550, 1e-06
    %v567 = vmul.f32 %v551, 1e-06
    %v568 = vmul.f32 %v552, 1e-06
    %v569 = vmul.f32 %v553, 1e-06
    %v570 = vmul.f32 %v554, 1e-06
    %v571 = vmul.f32 %v555, 1e-06
    %v572 = vadd.f32 %v24, %v556
    %v573 = vadd.f32 %v25, %v557
    %v574 = vadd.f32 %v26, %v558
    %v575 = vadd.f32 %v27, %v559
    %v576 = vadd.f32 %v28, %v560
    %v577 = vadd.f32 %v29, %v561
    %v578 = vadd.f32 %v30, %v562
    %v579 = vadd.f32 %v31, %v563
    %v580 = vadd.f32 %v32, %v564
    %v581 = vadd.f32 %v33, %v565
    %v582 = vadd.f32 %v34, %v566
    %v583 = vadd.f32 %v35, %v567
    %v584 = vadd.f32 %v36, %v568
    %v585 = vadd.f32 %v37, %v569
    %v586 = vadd.f32 %v38, %v570
    %v587 = vadd.f32 %v39, %v571
    %vm588 = vcmask 113664
    %589 = vst.msk [vmem:[%s1] sm:$0xff] %vm588, %v572
    %vm590 = vcmask 111616
    %591 = vst.msk [vmem:[%s1 + $0x8] sm:$0x3f] %vm590, %v573
    %592 = vst.msk [vmem:[%s1 + $0x90] sm:$0xff] %vm588, %v574
    %593 = vst.msk [vmem:[%s1 + $0x98] sm:$0x3f] %vm590, %v575
    %594 = vst.msk [vmem:[%s1 + $0x120] sm:$0xff] %vm588, %v576
    %595 = vst.msk [vmem:[%s1 + $0x128] sm:$0x3f] %vm590, %v577
    %596 = vst.msk [vmem:[%s1 + $0x1b0] sm:$0xff] %vm588, %v578
    %597 = vst.msk [vmem:[%s1 + $0x1b8] sm:$0x3f] %vm590, %v579
    %598 = vst.msk [vmem:[%s1 + $0x240] sm:$0xff] %vm588, %v580
    %599 = vst.msk [vmem:[%s1 + $0x248] sm:$0x3f] %vm590, %v581
    %600 = vst.msk [vmem:[%s1 + $0x2d0] sm:$0xff] %vm588, %v582
    %601 = vst.msk [vmem:[%s1 + $0x2d8] sm:$0x3f] %vm590, %v583
    %602 = vst.msk [vmem:[%s1 + $0x360] sm:$0xff] %vm588, %v584
    %603 = vst.msk [vmem:[%s1 + $0x368] sm:$0x3f] %vm590, %v585
    %604 = vst.msk [vmem:[%s1 + $0x3f0] sm:$0xff] %vm588, %v586
    %605 = vst.msk [vmem:[%s1 + $0x3f8] sm:$0x3f] %vm590, %v587
    %v606 = vld [vmem:[%s23] sm:$0xff]
    %v607 = vld [vmem:[%s23 + $0x8] sm:$0x3f]
    %v608 = vld [vmem:[%s23 + $0x10] sm:$0xff]
    %v609 = vld [vmem:[%s23 + $0x18] sm:$0x3f]
    %v610 = vld [vmem:[%s23 + $0x20] sm:$0xff]
    %v611 = vld [vmem:[%s23 + $0x28] sm:$0x3f]
    %v612 = vld [vmem:[%s23 + $0x30] sm:$0xff]
    %v613 = vld [vmem:[%s23 + $0x38] sm:$0x3f]
    %v614 = vld [vmem:[%s23 + $0x40] sm:$0xff]
    %v615 = vld [vmem:[%s23 + $0x48] sm:$0x3f]
    %v616 = vld [vmem:[%s23 + $0x50] sm:$0xff]
    %v617 = vld [vmem:[%s23 + $0x58] sm:$0x3f]
    %v618 = vld [vmem:[%s23 + $0x60] sm:$0xff]
    %v619 = vld [vmem:[%s23 + $0x68] sm:$0x3f]
    %v620 = vld [vmem:[%s23 + $0x70] sm:$0xff]
    %v621 = vld [vmem:[%s23 + $0x78] sm:$0x3f]
    %638 = vrot.lane.b32.xlu0 %v556, 1
    %v639 = vpop.permute.xlu0 %638
    %640 = vrot.lane.b32.xlu0 %v557, 1
    %v641 = vpop.permute.xlu0 %640
    %642 = vrot.lane.b32.xlu0 %v558, 1
    %v643 = vpop.permute.xlu0 %642
    %644 = vrot.lane.b32.xlu0 %v559, 1
    %v645 = vpop.permute.xlu0 %644
    %646 = vrot.lane.b32.xlu0 %v560, 1
    %v647 = vpop.permute.xlu0 %646
    %648 = vrot.lane.b32.xlu0 %v561, 1
    %v649 = vpop.permute.xlu0 %648
    %650 = vrot.lane.b32.xlu0 %v562, 1
    %v651 = vpop.permute.xlu0 %650
    %652 = vrot.lane.b32.xlu0 %v563, 1
    %v653 = vpop.permute.xlu0 %652
    %654 = vrot.lane.b32.xlu0 %v564, 1
    %v655 = vpop.permute.xlu0 %654
    %656 = vrot.lane.b32.xlu0 %v565, 1
    %v657 = vpop.permute.xlu0 %656
    %658 = vrot.lane.b32.xlu0 %v566, 1
    %v659 = vpop.permute.xlu0 %658
    %660 = vrot.lane.b32.xlu0 %v567, 1
    %v661 = vpop.permute.xlu0 %660
    %662 = vrot.lane.b32.xlu0 %v568, 1
    %v663 = vpop.permute.xlu0 %662
    %664 = vrot.lane.b32.xlu0 %v569, 1
    %v665 = vpop.permute.xlu0 %664
    %666 = vrot.lane.b32.xlu0 %v570, 1
    %v667 = vpop.permute.xlu0 %666
    %668 = vrot.lane.b32.xlu0 %v571, 1
    %v669 = vpop.permute.xlu0 %668
    %v686 = vadd.f32 %v606, %v639
    %v687 = vadd.f32 %v607, %v641
    %v688 = vadd.f32 %v608, %v643
    %v689 = vadd.f32 %v609, %v645
    %v690 = vadd.f32 %v610, %v647
    %v691 = vadd.f32 %v611, %v649
    %v692 = vadd.f32 %v612, %v651
    %v693 = vadd.f32 %v613, %v653
    %v694 = vadd.f32 %v614, %v655
    %v695 = vadd.f32 %v615, %v657
    %v696 = vadd.f32 %v616, %v659
    %v697 = vadd.f32 %v617, %v661
    %v698 = vadd.f32 %v618, %v663
    %v699 = vadd.f32 %v619, %v665
    %v700 = vadd.f32 %v620, %v667
    %v701 = vadd.f32 %v621, %v669
    %718 = vrot.lane.b32.xlu0 %v686, 127
    %v719 = vpop.permute.xlu0 %718
    %720 = vrot.lane.b32.xlu0 %v687, 127
    %v721 = vpop.permute.xlu0 %720
    %722 = vrot.lane.b32.xlu0 %v688, 127
    %v723 = vpop.permute.xlu0 %722
    %724 = vrot.lane.b32.xlu0 %v689, 127
    %v725 = vpop.permute.xlu0 %724
    %726 = vrot.lane.b32.xlu0 %v690, 127
    %v727 = vpop.permute.xlu0 %726
    %728 = vrot.lane.b32.xlu0 %v691, 127
    %v729 = vpop.permute.xlu0 %728
    %730 = vrot.lane.b32.xlu0 %v692, 127
    %v731 = vpop.permute.xlu0 %730
    %732 = vrot.lane.b32.xlu0 %v693, 127
    %v733 = vpop.permute.xlu0 %732
    %734 = vrot.lane.b32.xlu0 %v694, 127
    %v735 = vpop.permute.xlu0 %734
    %736 = vrot.lane.b32.xlu0 %v695, 127
    %v737 = vpop.permute.xlu0 %736
    %738 = vrot.lane.b32.xlu0 %v696, 127
    %v739 = vpop.permute.xlu0 %738
    %740 = vrot.lane.b32.xlu0 %v697, 127
    %v741 = vpop.permute.xlu0 %740
    %742 = vrot.lane.b32.xlu0 %v698, 127
    %v743 = vpop.permute.xlu0 %742
    %744 = vrot.lane.b32.xlu0 %v699, 127
    %v745 = vpop.permute.xlu0 %744
    %746 = vrot.lane.b32.xlu0 %v700, 127
    %v747 = vpop.permute.xlu0 %746
    %748 = vrot.lane.b32.xlu0 %v701, 127
    %v749 = vpop.permute.xlu0 %748
    %s766 = scalar_lea.vmem %s1, 16
    %767 = vst.msk [vmem:[%s766] sm:$0xff] %vm588, %v719
    %768 = vst.msk [vmem:[%s766 + $0x8] sm:$0x3f] %vm590, %v721
    %769 = vst.msk [vmem:[%s766 + $0x90] sm:$0xff] %vm588, %v723
    %770 = vst.msk [vmem:[%s766 + $0x98] sm:$0x3f] %vm590, %v725
    %771 = vst.msk [vmem:[%s766 + $0x120] sm:$0xff] %vm588, %v727
    %772 = vst.msk [vmem:[%s766 + $0x128] sm:$0x3f] %vm590, %v729
    %773 = vst.msk [vmem:[%s766 + $0x1b0] sm:$0xff] %vm588, %v731
    %774 = vst.msk [vmem:[%s766 + $0x1b8] sm:$0x3f] %vm590, %v733
    %775 = vst.msk [vmem:[%s766 + $0x240] sm:$0xff] %vm588, %v735
    %776 = vst.msk [vmem:[%s766 + $0x248] sm:$0x3f] %vm590, %v737
    %777 = vst.msk [vmem:[%s766 + $0x2d0] sm:$0xff] %vm588, %v739
    %778 = vst.msk [vmem:[%s766 + $0x2d8] sm:$0x3f] %vm590, %v741
    %779 = vst.msk [vmem:[%s766 + $0x360] sm:$0xff] %vm588, %v743
    %780 = vst.msk [vmem:[%s766 + $0x368] sm:$0x3f] %vm590, %v745
    %781 = vst.msk [vmem:[%s766 + $0x3f0] sm:$0xff] %vm588, %v747
    %782 = vst.msk [vmem:[%s766 + $0x3f8] sm:$0x3f] %vm590, %v749
    %v783 = vld [vmem:[%s23] sm:$0xff]
    %v784 = vld [vmem:[%s23 + $0x8] sm:$0x3f]
    %v785 = vld [vmem:[%s23 + $0x10] sm:$0xff]
    %v786 = vld [vmem:[%s23 + $0x18] sm:$0x3f]
    %v787 = vld [vmem:[%s23 + $0x20] sm:$0xff]
    %v788 = vld [vmem:[%s23 + $0x28] sm:$0x3f]
    %v789 = vld [vmem:[%s23 + $0x30] sm:$0xff]
    %v790 = vld [vmem:[%s23 + $0x38] sm:$0x3f]
    %v791 = vld [vmem:[%s23 + $0x40] sm:$0xff]
    %v792 = vld [vmem:[%s23 + $0x48] sm:$0x3f]
    %v793 = vld [vmem:[%s23 + $0x50] sm:$0xff]
    %v794 = vld [vmem:[%s23 + $0x58] sm:$0x3f]
    %v795 = vld [vmem:[%s23 + $0x60] sm:$0xff]
    %v796 = vld [vmem:[%s23 + $0x68] sm:$0x3f]
    %v797 = vld [vmem:[%s23 + $0x70] sm:$0xff]
    %v798 = vld [vmem:[%s23 + $0x78] sm:$0x3f]
    %799 = vrot.lane.b32.xlu0 %v556, 2
    %v800 = vpop.permute.xlu0 %799
    %801 = vrot.lane.b32.xlu0 %v557, 2
    %v802 = vpop.permute.xlu0 %801
    %803 = vrot.lane.b32.xlu0 %v558, 2
    %v804 = vpop.permute.xlu0 %803
    %805 = vrot.lane.b32.xlu0 %v559, 2
    %v806 = vpop.permute.xlu0 %805
    %807 = vrot.lane.b32.xlu0 %v560, 2
    %v808 = vpop.permute.xlu0 %807
    %809 = vrot.lane.b32.xlu0 %v561, 2
    %v810 = vpop.permute.xlu0 %809
    %811 = vrot.lane.b32.xlu0 %v562, 2
    %v812 = vpop.permute.xlu0 %811
    %813 = vrot.lane.b32.xlu0 %v563, 2
    %v814 = vpop.permute.xlu0 %813
    %815 = vrot.lane.b32.xlu0 %v564, 2
    %v816 = vpop.permute.xlu0 %815
    %817 = vrot.lane.b32.xlu0 %v565, 2
    %v818 = vpop.permute.xlu0 %817
    %819 = vrot.lane.b32.xlu0 %v566, 2
    %v820 = vpop.permute.xlu0 %819
    %821 = vrot.lane.b32.xlu0 %v567, 2
    %v822 = vpop.permute.xlu0 %821
    %823 = vrot.lane.b32.xlu0 %v568, 2
    %v824 = vpop.permute.xlu0 %823
    %825 = vrot.lane.b32.xlu0 %v569, 2
    %v826 = vpop.permute.xlu0 %825
    %827 = vrot.lane.b32.xlu0 %v570, 2
    %v828 = vpop.permute.xlu0 %827
    %829 = vrot.lane.b32.xlu0 %v571, 2
    %v830 = vpop.permute.xlu0 %829
    %v847 = vadd.f32 %v783, %v800
    %v848 = vadd.f32 %v784, %v802
    %v849 = vadd.f32 %v785, %v804
    %v850 = vadd.f32 %v786, %v806
    %v851 = vadd.f32 %v787, %v808
    %v852 = vadd.f32 %v788, %v810
    %v853 = vadd.f32 %v789, %v812
    %v854 = vadd.f32 %v790, %v814
    %v855 = vadd.f32 %v791, %v816
    %v856 = vadd.f32 %v792, %v818
    %v857 = vadd.f32 %v793, %v820
    %v858 = vadd.f32 %v794, %v822
    %v859 = vadd.f32 %v795, %v824
    %v860 = vadd.f32 %v796, %v826
    %v861 = vadd.f32 %v797, %v828
    %v862 = vadd.f32 %v798, %v830
    %879 = vrot.lane.b32.xlu0 %v847, 126
    %v880 = vpop.permute.xlu0 %879
    %881 = vrot.lane.b32.xlu0 %v848, 126
    %v882 = vpop.permute.xlu0 %881
    %883 = vrot.lane.b32.xlu0 %v849, 126
    %v884 = vpop.permute.xlu0 %883
    %885 = vrot.lane.b32.xlu0 %v850, 126
    %v886 = vpop.permute.xlu0 %885
    %887 = vrot.lane.b32.xlu0 %v851, 126
    %v888 = vpop.permute.xlu0 %887
    %889 = vrot.lane.b32.xlu0 %v852, 126
    %v890 = vpop.permute.xlu0 %889
    %891 = vrot.lane.b32.xlu0 %v853, 126
    %v892 = vpop.permute.xlu0 %891
    %893 = vrot.lane.b32.xlu0 %v854, 126
    %v894 = vpop.permute.xlu0 %893
    %895 = vrot.lane.b32.xlu0 %v855, 126
    %v896 = vpop.permute.xlu0 %895
    %897 = vrot.lane.b32.xlu0 %v856, 126
    %v898 = vpop.permute.xlu0 %897
    %899 = vrot.lane.b32.xlu0 %v857, 126
    %v900 = vpop.permute.xlu0 %899
    %901 = vrot.lane.b32.xlu0 %v858, 126
    %v902 = vpop.permute.xlu0 %901
    %903 = vrot.lane.b32.xlu0 %v859, 126
    %v904 = vpop.permute.xlu0 %903
    %905 = vrot.lane.b32.xlu0 %v860, 126
    %v906 = vpop.permute.xlu0 %905
    %907 = vrot.lane.b32.xlu0 %v861, 126
    %v908 = vpop.permute.xlu0 %907
    %909 = vrot.lane.b32.xlu0 %v862, 126
    %v910 = vpop.permute.xlu0 %909
    %s927 = scalar_lea.vmem %s1, 32
    %928 = vst.msk [vmem:[%s927] sm:$0xff] %vm588, %v880
    %929 = vst.msk [vmem:[%s927 + $0x8] sm:$0x3f] %vm590, %v882
    %930 = vst.msk [vmem:[%s927 + $0x90] sm:$0xff] %vm588, %v884
    %931 = vst.msk [vmem:[%s927 + $0x98] sm:$0x3f] %vm590, %v886
    %932 = vst.msk [vmem:[%s927 + $0x120] sm:$0xff] %vm588, %v888
    %933 = vst.msk [vmem:[%s927 + $0x128] sm:$0x3f] %vm590, %v890
    %934 = vst.msk [vmem:[%s927 + $0x1b0] sm:$0xff] %vm588, %v892
    %935 = vst.msk [vmem:[%s927 + $0x1b8] sm:$0x3f] %vm590, %v894
    %936 = vst.msk [vmem:[%s927 + $0x240] sm:$0xff] %vm588, %v896
    %937 = vst.msk [vmem:[%s927 + $0x248] sm:$0x3f] %vm590, %v898
    %938 = vst.msk [vmem:[%s927 + $0x2d0] sm:$0xff] %vm588, %v900
    %939 = vst.msk [vmem:[%s927 + $0x2d8] sm:$0x3f] %vm590, %v902
    %940 = vst.msk [vmem:[%s927 + $0x360] sm:$0xff] %vm588, %v904
    %941 = vst.msk [vmem:[%s927 + $0x368] sm:$0x3f] %vm590, %v906
    %942 = vst.msk [vmem:[%s927 + $0x3f0] sm:$0xff] %vm588, %v908
    %943 = vst.msk [vmem:[%s927 + $0x3f8] sm:$0x3f] %vm590, %v910
    %v944 = vld [vmem:[%s201] sm:$0xff]
    %v945 = vld [vmem:[%s201 + $0x8] sm:$0x3f]
    %v946 = vld [vmem:[%s201 + $0x10] sm:$0xff]
    %v947 = vld [vmem:[%s201 + $0x18] sm:$0x3f]
    %v948 = vld [vmem:[%s201 + $0x20] sm:$0xff]
    %v949 = vld [vmem:[%s201 + $0x28] sm:$0x3f]
    %v950 = vld [vmem:[%s201 + $0x30] sm:$0xff]
    %v951 = vld [vmem:[%s201 + $0x38] sm:$0x3f]
    %v952 = vld [vmem:[%s201 + $0x40] sm:$0xff]
    %v953 = vld [vmem:[%s201 + $0x48] sm:$0x3f]
    %v954 = vld [vmem:[%s201 + $0x50] sm:$0xff]
    %v955 = vld [vmem:[%s201 + $0x58] sm:$0x3f]
    %v956 = vld [vmem:[%s201 + $0x60] sm:$0xff]
    %v957 = vld [vmem:[%s201 + $0x68] sm:$0x3f]
    %v958 = vld [vmem:[%s201 + $0x70] sm:$0xff]
    %v959 = vld [vmem:[%s201 + $0x78] sm:$0x3f]
    %v960 = vadd.f32 %v944, %v556
    %v961 = vadd.f32 %v945, %v557
    %v962 = vadd.f32 %v946, %v558
    %v963 = vadd.f32 %v947, %v559
    %v964 = vadd.f32 %v948, %v560
    %v965 = vadd.f32 %v949, %v561
    %v966 = vadd.f32 %v950, %v562
    %v967 = vadd.f32 %v951, %v563
    %v968 = vadd.f32 %v952, %v564
    %v969 = vadd.f32 %v953, %v565
    %v970 = vadd.f32 %v954, %v566
    %v971 = vadd.f32 %v955, %v567
    %v972 = vadd.f32 %v956, %v568
    %v973 = vadd.f32 %v957, %v569
    %v974 = vadd.f32 %v958, %v570
    %v975 = vadd.f32 %v959, %v571
    %s976 = scalar_lea.vmem %s1, 48
    %977 = vst.msk [vmem:[%s976] sm:$0xff] %vm588, %v960
    %978 = vst.msk [vmem:[%s976 + $0x8] sm:$0x3f] %vm590, %v961
    %979 = vst.msk [vmem:[%s976 + $0x90] sm:$0xff] %vm588, %v962
    %980 = vst.msk [vmem:[%s976 + $0x98] sm:$0x3f] %vm590, %v963
    %981 = vst.msk [vmem:[%s976 + $0x120] sm:$0xff] %vm588, %v964
    %982 = vst.msk [vmem:[%s976 + $0x128] sm:$0x3f] %vm590, %v965
    %983 = vst.msk [vmem:[%s976 + $0x1b0] sm:$0xff] %vm588, %v966
    %984 = vst.msk [vmem:[%s976 + $0x1b8] sm:$0x3f] %vm590, %v967
    %985 = vst.msk [vmem:[%s976 + $0x240] sm:$0xff] %vm588, %v968
    %986 = vst.msk [vmem:[%s976 + $0x248] sm:$0x3f] %vm590, %v969
    %987 = vst.msk [vmem:[%s976 + $0x2d0] sm:$0xff] %vm588, %v970
    %988 = vst.msk [vmem:[%s976 + $0x2d8] sm:$0x3f] %vm590, %v971
    %989 = vst.msk [vmem:[%s976 + $0x360] sm:$0xff] %vm588, %v972
    %990 = vst.msk [vmem:[%s976 + $0x368] sm:$0x3f] %vm590, %v973
    %991 = vst.msk [vmem:[%s976 + $0x3f0] sm:$0xff] %vm588, %v974
    %992 = vst.msk [vmem:[%s976 + $0x3f8] sm:$0x3f] %vm590, %v975
    %v993 = vld [vmem:[%s201] sm:$0xff]
    %v994 = vld [vmem:[%s201 + $0x8] sm:$0x3f]
    %v995 = vld [vmem:[%s201 + $0x10] sm:$0xff]
    %v996 = vld [vmem:[%s201 + $0x18] sm:$0x3f]
    %v997 = vld [vmem:[%s201 + $0x20] sm:$0xff]
    %v998 = vld [vmem:[%s201 + $0x28] sm:$0x3f]
    %v999 = vld [vmem:[%s201 + $0x30] sm:$0xff]
    %v1000 = vld [vmem:[%s201 + $0x38] sm:$0x3f]
    %v1001 = vld [vmem:[%s201 + $0x40] sm:$0xff]
    %v1002 = vld [vmem:[%s201 + $0x48] sm:$0x3f]
    %v1003 = vld [vmem:[%s201 + $0x50] sm:$0xff]
    %v1004 = vld [vmem:[%s201 + $0x58] sm:$0x3f]
    %v1005 = vld [vmem:[%s201 + $0x60] sm:$0xff]
    %v1006 = vld [vmem:[%s201 + $0x68] sm:$0x3f]
    %v1007 = vld [vmem:[%s201 + $0x70] sm:$0xff]
    %v1008 = vld [vmem:[%s201 + $0x78] sm:$0x3f]
    %v1009 = vadd.f32 %v993, %v639
    %v1010 = vadd.f32 %v994, %v641
    %v1011 = vadd.f32 %v995, %v643
    %v1012 = vadd.f32 %v996, %v645
    %v1013 = vadd.f32 %v997, %v647
    %v1014 = vadd.f32 %v998, %v649
    %v1015 = vadd.f32 %v999, %v651
    %v1016 = vadd.f32 %v1000, %v653
    %v1017 = vadd.f32 %v1001, %v655
    %v1018 = vadd.f32 %v1002, %v657
    %v1019 = vadd.f32 %v1003, %v659
    %v1020 = vadd.f32 %v1004, %v661
    %v1021 = vadd.f32 %v1005, %v663
    %v1022 = vadd.f32 %v1006, %v665
    %v1023 = vadd.f32 %v1007, %v667
    %v1024 = vadd.f32 %v1008, %v669
    %1041 = vrot.lane.b32.xlu0 %v1009, 127
    %v1042 = vpop.permute.xlu0 %1041
    %1043 = vrot.lane.b32.xlu0 %v1010, 127
    %v1044 = vpop.permute.xlu0 %1043
    %1045 = vrot.lane.b32.xlu0 %v1011, 127
    %v1046 = vpop.permute.xlu0 %1045
    %1047 = vrot.lane.b32.xlu0 %v1012, 127
    %v1048 = vpop.permute.xlu0 %1047
    %1049 = vrot.lane.b32.xlu0 %v1013, 127
    %v1050 = vpop.permute.xlu0 %1049
    %1051 = vrot.lane.b32.xlu0 %v1014, 127
    %v1052 = vpop.permute.xlu0 %1051
    %1053 = vrot.lane.b32.xlu0 %v1015, 127
    %v1054 = vpop.permute.xlu0 %1053
    %1055 = vrot.lane.b32.xlu0 %v1016, 127
    %v1056 = vpop.permute.xlu0 %1055
    %1057 = vrot.lane.b32.xlu0 %v1017, 127
    %v1058 = vpop.permute.xlu0 %1057
    %1059 = vrot.lane.b32.xlu0 %v1018, 127
    %v1060 = vpop.permute.xlu0 %1059
    %1061 = vrot.lane.b32.xlu0 %v1019, 127
    %v1062 = vpop.permute.xlu0 %1061
    %1063 = vrot.lane.b32.xlu0 %v1020, 127
    %v1064 = vpop.permute.xlu0 %1063
    %1065 = vrot.lane.b32.xlu0 %v1021, 127
    %v1066 = vpop.permute.xlu0 %1065
    %1067 = vrot.lane.b32.xlu0 %v1022, 127
    %v1068 = vpop.permute.xlu0 %1067
    %1069 = vrot.lane.b32.xlu0 %v1023, 127
    %v1070 = vpop.permute.xlu0 %1069
    %1071 = vrot.lane.b32.xlu0 %v1024, 127
    %v1072 = vpop.permute.xlu0 %1071
    %s1089 = scalar_lea.vmem %s1, 64
    %1090 = vst.msk [vmem:[%s1089] sm:$0xff] %vm588, %v1042
    %1091 = vst.msk [vmem:[%s1089 + $0x8] sm:$0x3f] %vm590, %v1044
    %1092 = vst.msk [vmem:[%s1089 + $0x90] sm:$0xff] %vm588, %v1046
    %1093 = vst.msk [vmem:[%s1089 + $0x98] sm:$0x3f] %vm590, %v1048
    %1094 = vst.msk [vmem:[%s1089 + $0x120] sm:$0xff] %vm588, %v1050
    %1095 = vst.msk [vmem:[%s1089 + $0x128] sm:$0x3f] %vm590, %v1052
    %1096 = vst.msk [vmem:[%s1089 + $0x1b0] sm:$0xff] %vm588, %v1054
    %1097 = vst.msk [vmem:[%s1089 + $0x1b8] sm:$0x3f] %vm590, %v1056
    %1098 = vst.msk [vmem:[%s1089 + $0x240] sm:$0xff] %vm588, %v1058
    %1099 = vst.msk [vmem:[%s1089 + $0x248] sm:$0x3f] %vm590, %v1060
    %1100 = vst.msk [vmem:[%s1089 + $0x2d0] sm:$0xff] %vm588, %v1062
    %1101 = vst.msk [vmem:[%s1089 + $0x2d8] sm:$0x3f] %vm590, %v1064
    %1102 = vst.msk [vmem:[%s1089 + $0x360] sm:$0xff] %vm588, %v1066
    %1103 = vst.msk [vmem:[%s1089 + $0x368] sm:$0x3f] %vm590, %v1068
    %1104 = vst.msk [vmem:[%s1089 + $0x3f0] sm:$0xff] %vm588, %v1070
    %1105 = vst.msk [vmem:[%s1089 + $0x3f8] sm:$0x3f] %vm590, %v1072
    %v1106 = vld [vmem:[%s201] sm:$0xff]
    %v1107 = vld [vmem:[%s201 + $0x8] sm:$0x3f]
    %v1108 = vld [vmem:[%s201 + $0x10] sm:$0xff]
    %v1109 = vld [vmem:[%s201 + $0x18] sm:$0x3f]
    %v1110 = vld [vmem:[%s201 + $0x20] sm:$0xff]
    %v1111 = vld [vmem:[%s201 + $0x28] sm:$0x3f]
    %v1112 = vld [vmem:[%s201 + $0x30] sm:$0xff]
    %v1113 = vld [vmem:[%s201 + $0x38] sm:$0x3f]
    %v1114 = vld [vmem:[%s201 + $0x40] sm:$0xff]
    %v1115 = vld [vmem:[%s201 + $0x48] sm:$0x3f]
    %v1116 = vld [vmem:[%s201 + $0x50] sm:$0xff]
    %v1117 = vld [vmem:[%s201 + $0x58] sm:$0x3f]
    %v1118 = vld [vmem:[%s201 + $0x60] sm:$0xff]
    %v1119 = vld [vmem:[%s201 + $0x68] sm:$0x3f]
    %v1120 = vld [vmem:[%s201 + $0x70] sm:$0xff]
    %v1121 = vld [vmem:[%s201 + $0x78] sm:$0x3f]
    %v1122 = vadd.f32 %v1106, %v800
    %v1123 = vadd.f32 %v1107, %v802
    %v1124 = vadd.f32 %v1108, %v804
    %v1125 = vadd.f32 %v1109, %v806
    %v1126 = vadd.f32 %v1110, %v808
    %v1127 = vadd.f32 %v1111, %v810
    %v1128 = vadd.f32 %v1112, %v812
    %v1129 = vadd.f32 %v1113, %v814
    %v1130 = vadd.f32 %v1114, %v816
    %v1131 = vadd.f32 %v1115, %v818
    %v1132 = vadd.f32 %v1116, %v820
    %v1133 = vadd.f32 %v1117, %v822
    %v1134 = vadd.f32 %v1118, %v824
    %v1135 = vadd.f32 %v1119, %v826
    %v1136 = vadd.f32 %v1120, %v828
    %v1137 = vadd.f32 %v1121, %v830
    %1154 = vrot.lane.b32.xlu0 %v1122, 126
    %v1155 = vpop.permute.xlu0 %1154
    %1156 = vrot.lane.b32.xlu0 %v1123, 126
    %v1157 = vpop.permute.xlu0 %1156
    %1158 = vrot.lane.b32.xlu0 %v1124, 126
    %v1159 = vpop.permute.xlu0 %1158
    %1160 = vrot.lane.b32.xlu0 %v1125, 126
    %v1161 = vpop.permute.xlu0 %1160
    %1162 = vrot.lane.b32.xlu0 %v1126, 126
    %v1163 = vpop.permute.xlu0 %1162
    %1164 = vrot.lane.b32.xlu0 %v1127, 126
    %v1165 = vpop.permute.xlu0 %1164
    %1166 = vrot.lane.b32.xlu0 %v1128, 126
    %v1167 = vpop.permute.xlu0 %1166
    %1168 = vrot.lane.b32.xlu0 %v1129, 126
    %v1169 = vpop.permute.xlu0 %1168
    %1170 = vrot.lane.b32.xlu0 %v1130, 126
    %v1171 = vpop.permute.xlu0 %1170
    %1172 = vrot.lane.b32.xlu0 %v1131, 126
    %v1173 = vpop.permute.xlu0 %1172
    %1174 = vrot.lane.b32.xlu0 %v1132, 126
    %v1175 = vpop.permute.xlu0 %1174
    %1176 = vrot.lane.b32.xlu0 %v1133, 126
    %v1177 = vpop.permute.xlu0 %1176
    %1178 = vrot.lane.b32.xlu0 %v1134, 126
    %v1179 = vpop.permute.xlu0 %1178
    %1180 = vrot.lane.b32.xlu0 %v1135, 126
    %v1181 = vpop.permute.xlu0 %1180
    %1182 = vrot.lane.b32.xlu0 %v1136, 126
    %v1183 = vpop.permute.xlu0 %1182
    %1184 = vrot.lane.b32.xlu0 %v1137, 126
    %v1185 = vpop.permute.xlu0 %1184
    %s1202 = scalar_lea.vmem %s1, 80
    %1203 = vst.msk [vmem:[%s1202] sm:$0xff] %vm588, %v1155
    %1204 = vst.msk [vmem:[%s1202 + $0x8] sm:$0x3f] %vm590, %v1157
    %1205 = vst.msk [vmem:[%s1202 + $0x90] sm:$0xff] %vm588, %v1159
    %1206 = vst.msk [vmem:[%s1202 + $0x98] sm:$0x3f] %vm590, %v1161
    %1207 = vst.msk [vmem:[%s1202 + $0x120] sm:$0xff] %vm588, %v1163
    %1208 = vst.msk [vmem:[%s1202 + $0x128] sm:$0x3f] %vm590, %v1165
    %1209 = vst.msk [vmem:[%s1202 + $0x1b0] sm:$0xff] %vm588, %v1167
    %1210 = vst.msk [vmem:[%s1202 + $0x1b8] sm:$0x3f] %vm590, %v1169
    %1211 = vst.msk [vmem:[%s1202 + $0x240] sm:$0xff] %vm588, %v1171
    %1212 = vst.msk [vmem:[%s1202 + $0x248] sm:$0x3f] %vm590, %v1173
    %1213 = vst.msk [vmem:[%s1202 + $0x2d0] sm:$0xff] %vm588, %v1175
    %1214 = vst.msk [vmem:[%s1202 + $0x2d8] sm:$0x3f] %vm590, %v1177
    %1215 = vst.msk [vmem:[%s1202 + $0x360] sm:$0xff] %vm588, %v1179
    %1216 = vst.msk [vmem:[%s1202 + $0x368] sm:$0x3f] %vm590, %v1181
    %1217 = vst.msk [vmem:[%s1202 + $0x3f0] sm:$0xff] %vm588, %v1183
    %1218 = vst.msk [vmem:[%s1202 + $0x3f8] sm:$0x3f] %vm590, %v1185
    %v1219 = vld [vmem:[%s379] sm:$0xff]
    %v1220 = vld [vmem:[%s379 + $0x8] sm:$0x3f]
    %v1221 = vld [vmem:[%s379 + $0x10] sm:$0xff]
    %v1222 = vld [vmem:[%s379 + $0x18] sm:$0x3f]
    %v1223 = vld [vmem:[%s379 + $0x20] sm:$0xff]
    %v1224 = vld [vmem:[%s379 + $0x28] sm:$0x3f]
    %v1225 = vld [vmem:[%s379 + $0x30] sm:$0xff]
    %v1226 = vld [vmem:[%s379 + $0x38] sm:$0x3f]
    %v1227 = vld [vmem:[%s379 + $0x40] sm:$0xff]
    %v1228 = vld [vmem:[%s379 + $0x48] sm:$0x3f]
    %v1229 = vld [vmem:[%s379 + $0x50] sm:$0xff]
    %v1230 = vld [vmem:[%s379 + $0x58] sm:$0x3f]
    %v1231 = vld [vmem:[%s379 + $0x60] sm:$0xff]
    %v1232 = vld [vmem:[%s379 + $0x68] sm:$0x3f]
    %v1233 = vld [vmem:[%s379 + $0x70] sm:$0xff]
    %v1234 = vld [vmem:[%s379 + $0x78] sm:$0x3f]
    %v1235 = vadd.f32 %v1219, %v556
    %v1236 = vadd.f32 %v1220, %v557
    %v1237 = vadd.f32 %v1221, %v558
    %v1238 = vadd.f32 %v1222, %v559
    %v1239 = vadd.f32 %v1223, %v560
    %v1240 = vadd.f32 %v1224, %v561
    %v1241 = vadd.f32 %v1225, %v562
    %v1242 = vadd.f32 %v1226, %v563
    %v1243 = vadd.f32 %v1227, %v564
    %v1244 = vadd.f32 %v1228, %v565
    %v1245 = vadd.f32 %v1229, %v566
    %v1246 = vadd.f32 %v1230, %v567
    %v1247 = vadd.f32 %v1231, %v568
    %v1248 = vadd.f32 %v1232, %v569
    %v1249 = vadd.f32 %v1233, %v570
    %v1250 = vadd.f32 %v1234, %v571
    %s1251 = scalar_lea.vmem %s1, 96
    %1252 = vst.msk [vmem:[%s1251] sm:$0xff] %vm588, %v1235
    %1253 = vst.msk [vmem:[%s1251 + $0x8] sm:$0x3f] %vm590, %v1236
    %1254 = vst.msk [vmem:[%s1251 + $0x90] sm:$0xff] %vm588, %v1237
    %1255 = vst.msk [vmem:[%s1251 + $0x98] sm:$0x3f] %vm590, %v1238
    %1256 = vst.msk [vmem:[%s1251 + $0x120] sm:$0xff] %vm588, %v1239
    %1257 = vst.msk [vmem:[%s1251 + $0x128] sm:$0x3f] %vm590, %v1240
    %1258 = vst.msk [vmem:[%s1251 + $0x1b0] sm:$0xff] %vm588, %v1241
    %1259 = vst.msk [vmem:[%s1251 + $0x1b8] sm:$0x3f] %vm590, %v1242
    %1260 = vst.msk [vmem:[%s1251 + $0x240] sm:$0xff] %vm588, %v1243
    %1261 = vst.msk [vmem:[%s1251 + $0x248] sm:$0x3f] %vm590, %v1244
    %1262 = vst.msk [vmem:[%s1251 + $0x2d0] sm:$0xff] %vm588, %v1245
    %1263 = vst.msk [vmem:[%s1251 + $0x2d8] sm:$0x3f] %vm590, %v1246
    %1264 = vst.msk [vmem:[%s1251 + $0x360] sm:$0xff] %vm588, %v1247
    %1265 = vst.msk [vmem:[%s1251 + $0x368] sm:$0x3f] %vm590, %v1248
    %1266 = vst.msk [vmem:[%s1251 + $0x3f0] sm:$0xff] %vm588, %v1249
    %1267 = vst.msk [vmem:[%s1251 + $0x3f8] sm:$0x3f] %vm590, %v1250
    %v1268 = vld [vmem:[%s379] sm:$0xff]
    %v1269 = vld [vmem:[%s379 + $0x8] sm:$0x3f]
    %v1270 = vld [vmem:[%s379 + $0x10] sm:$0xff]
    %v1271 = vld [vmem:[%s379 + $0x18] sm:$0x3f]
    %v1272 = vld [vmem:[%s379 + $0x20] sm:$0xff]
    %v1273 = vld [vmem:[%s379 + $0x28] sm:$0x3f]
    %v1274 = vld [vmem:[%s379 + $0x30] sm:$0xff]
    %v1275 = vld [vmem:[%s379 + $0x38] sm:$0x3f]
    %v1276 = vld [vmem:[%s379 + $0x40] sm:$0xff]
    %v1277 = vld [vmem:[%s379 + $0x48] sm:$0x3f]
    %v1278 = vld [vmem:[%s379 + $0x50] sm:$0xff]
    %v1279 = vld [vmem:[%s379 + $0x58] sm:$0x3f]
    %v1280 = vld [vmem:[%s379 + $0x60] sm:$0xff]
    %v1281 = vld [vmem:[%s379 + $0x68] sm:$0x3f]
    %v1282 = vld [vmem:[%s379 + $0x70] sm:$0xff]
    %v1283 = vld [vmem:[%s379 + $0x78] sm:$0x3f]
    %v1284 = vadd.f32 %v1268, %v639
    %v1285 = vadd.f32 %v1269, %v641
    %v1286 = vadd.f32 %v1270, %v643
    %v1287 = vadd.f32 %v1271, %v645
    %v1288 = vadd.f32 %v1272, %v647
    %v1289 = vadd.f32 %v1273, %v649
    %v1290 = vadd.f32 %v1274, %v651
    %v1291 = vadd.f32 %v1275, %v653
    %v1292 = vadd.f32 %v1276, %v655
    %v1293 = vadd.f32 %v1277, %v657
    %v1294 = vadd.f32 %v1278, %v659
    %v1295 = vadd.f32 %v1279, %v661
    %v1296 = vadd.f32 %v1280, %v663
    %v1297 = vadd.f32 %v1281, %v665
    %v1298 = vadd.f32 %v1282, %v667
    %v1299 = vadd.f32 %v1283, %v669
    %1316 = vrot.lane.b32.xlu0 %v1284, 127
    %v1317 = vpop.permute.xlu0 %1316
    %1318 = vrot.lane.b32.xlu0 %v1285, 127
    %v1319 = vpop.permute.xlu0 %1318
    %1320 = vrot.lane.b32.xlu0 %v1286, 127
    %v1321 = vpop.permute.xlu0 %1320
    %1322 = vrot.lane.b32.xlu0 %v1287, 127
    %v1323 = vpop.permute.xlu0 %1322
    %1324 = vrot.lane.b32.xlu0 %v1288, 127
    %v1325 = vpop.permute.xlu0 %1324
    %1326 = vrot.lane.b32.xlu0 %v1289, 127
    %v1327 = vpop.permute.xlu0 %1326
    %1328 = vrot.lane.b32.xlu0 %v1290, 127
    %v1329 = vpop.permute.xlu0 %1328
    %1330 = vrot.lane.b32.xlu0 %v1291, 127
    %v1331 = vpop.permute.xlu0 %1330
    %1332 = vrot.lane.b32.xlu0 %v1292, 127
    %v1333 = vpop.permute.xlu0 %1332
    %1334 = vrot.lane.b32.xlu0 %v1293, 127
    %v1335 = vpop.permute.xlu0 %1334
    %1336 = vrot.lane.b32.xlu0 %v1294, 127
    %v1337 = vpop.permute.xlu0 %1336
    %1338 = vrot.lane.b32.xlu0 %v1295, 127
    %v1339 = vpop.permute.xlu0 %1338
    %1340 = vrot.lane.b32.xlu0 %v1296, 127
    %v1341 = vpop.permute.xlu0 %1340
    %1342 = vrot.lane.b32.xlu0 %v1297, 127
    %v1343 = vpop.permute.xlu0 %1342
    %1344 = vrot.lane.b32.xlu0 %v1298, 127
    %v1345 = vpop.permute.xlu0 %1344
    %1346 = vrot.lane.b32.xlu0 %v1299, 127
    %v1347 = vpop.permute.xlu0 %1346
    %s1364 = scalar_lea.vmem %s1, 112
    %1365 = vst.msk [vmem:[%s1364] sm:$0xff] %vm588, %v1317
    %1366 = vst.msk [vmem:[%s1364 + $0x8] sm:$0x3f] %vm590, %v1319
    %1367 = vst.msk [vmem:[%s1364 + $0x90] sm:$0xff] %vm588, %v1321
    %1368 = vst.msk [vmem:[%s1364 + $0x98] sm:$0x3f] %vm590, %v1323
    %1369 = vst.msk [vmem:[%s1364 + $0x120] sm:$0xff] %vm588, %v1325
    %1370 = vst.msk [vmem:[%s1364 + $0x128] sm:$0x3f] %vm590, %v1327
    %1371 = vst.msk [vmem:[%s1364 + $0x1b0] sm:$0xff] %vm588, %v1329
    %1372 = vst.msk [vmem:[%s1364 + $0x1b8] sm:$0x3f] %vm590, %v1331
    %1373 = vst.msk [vmem:[%s1364 + $0x240] sm:$0xff] %vm588, %v1333
    %1374 = vst.msk [vmem:[%s1364 + $0x248] sm:$0x3f] %vm590, %v1335
    %1375 = vst.msk [vmem:[%s1364 + $0x2d0] sm:$0xff] %vm588, %v1337
    %1376 = vst.msk [vmem:[%s1364 + $0x2d8] sm:$0x3f] %vm590, %v1339
    %1377 = vst.msk [vmem:[%s1364 + $0x360] sm:$0xff] %vm588, %v1341
    %1378 = vst.msk [vmem:[%s1364 + $0x368] sm:$0x3f] %vm590, %v1343
    %1379 = vst.msk [vmem:[%s1364 + $0x3f0] sm:$0xff] %vm588, %v1345
    %1380 = vst.msk [vmem:[%s1364 + $0x3f8] sm:$0x3f] %vm590, %v1347
    %v1381 = vld [vmem:[%s379] sm:$0xff]
    %v1382 = vld [vmem:[%s379 + $0x8] sm:$0x3f]
    %v1383 = vld [vmem:[%s379 + $0x10] sm:$0xff]
    %v1384 = vld [vmem:[%s379 + $0x18] sm:$0x3f]
    %v1385 = vld [vmem:[%s379 + $0x20] sm:$0xff]
    %v1386 = vld [vmem:[%s379 + $0x28] sm:$0x3f]
    %v1387 = vld [vmem:[%s379 + $0x30] sm:$0xff]
    %v1388 = vld [vmem:[%s379 + $0x38] sm:$0x3f]
    %v1389 = vld [vmem:[%s379 + $0x40] sm:$0xff]
    %v1390 = vld [vmem:[%s379 + $0x48] sm:$0x3f]
    %v1391 = vld [vmem:[%s379 + $0x50] sm:$0xff]
    %v1392 = vld [vmem:[%s379 + $0x58] sm:$0x3f]
    %v1393 = vld [vmem:[%s379 + $0x60] sm:$0xff]
    %v1394 = vld [vmem:[%s379 + $0x68] sm:$0x3f]
    %v1395 = vld [vmem:[%s379 + $0x70] sm:$0xff]
    %v1396 = vld [vmem:[%s379 + $0x78] sm:$0x3f]
    %v1397 = vadd.f32 %v1381, %v800
    %v1398 = vadd.f32 %v1382, %v802
    %v1399 = vadd.f32 %v1383, %v804
    %v1400 = vadd.f32 %v1384, %v806
    %v1401 = vadd.f32 %v1385, %v808
    %v1402 = vadd.f32 %v1386, %v810
    %v1403 = vadd.f32 %v1387, %v812
    %v1404 = vadd.f32 %v1388, %v814
    %v1405 = vadd.f32 %v1389, %v816
    %v1406 = vadd.f32 %v1390, %v818
    %v1407 = vadd.f32 %v1391, %v820
    %v1408 = vadd.f32 %v1392, %v822
    %v1409 = vadd.f32 %v1393, %v824
    %v1410 = vadd.f32 %v1394, %v826
    %v1411 = vadd.f32 %v1395, %v828
    %v1412 = vadd.f32 %v1396, %v830
    %1429 = vrot.lane.b32.xlu0 %v1397, 126
    %v1430 = vpop.permute.xlu0 %1429
    %1431 = vrot.lane.b32.xlu0 %v1398, 126
    %v1432 = vpop.permute.xlu0 %1431
    %1433 = vrot.lane.b32.xlu0 %v1399, 126
    %v1434 = vpop.permute.xlu0 %1433
    %1435 = vrot.lane.b32.xlu0 %v1400, 126
    %v1436 = vpop.permute.xlu0 %1435
    %1437 = vrot.lane.b32.xlu0 %v1401, 126
    %v1438 = vpop.permute.xlu0 %1437
    %1439 = vrot.lane.b32.xlu0 %v1402, 126
    %v1440 = vpop.permute.xlu0 %1439
    %1441 = vrot.lane.b32.xlu0 %v1403, 126
    %v1442 = vpop.permute.xlu0 %1441
    %1443 = vrot.lane.b32.xlu0 %v1404, 126
    %v1444 = vpop.permute.xlu0 %1443
    %1445 = vrot.lane.b32.xlu0 %v1405, 126
    %v1446 = vpop.permute.xlu0 %1445
    %1447 = vrot.lane.b32.xlu0 %v1406, 126
    %v1448 = vpop.permute.xlu0 %1447
    %1449 = vrot.lane.b32.xlu0 %v1407, 126
    %v1450 = vpop.permute.xlu0 %1449
    %1451 = vrot.lane.b32.xlu0 %v1408, 126
    %v1452 = vpop.permute.xlu0 %1451
    %1453 = vrot.lane.b32.xlu0 %v1409, 126
    %v1454 = vpop.permute.xlu0 %1453
    %1455 = vrot.lane.b32.xlu0 %v1410, 126
    %v1456 = vpop.permute.xlu0 %1455
    %1457 = vrot.lane.b32.xlu0 %v1411, 126
    %v1458 = vpop.permute.xlu0 %1457
    %1459 = vrot.lane.b32.xlu0 %v1412, 126
    %v1460 = vpop.permute.xlu0 %1459
    %s1477 = scalar_lea.vmem %s1, 128
    %1478 = vst.msk [vmem:[%s1477] sm:$0xff] %vm588, %v1430
    %1479 = vst.msk [vmem:[%s1477 + $0x8] sm:$0x3f] %vm590, %v1432
    %1480 = vst.msk [vmem:[%s1477 + $0x90] sm:$0xff] %vm588, %v1434
    %1481 = vst.msk [vmem:[%s1477 + $0x98] sm:$0x3f] %vm590, %v1436
    %1482 = vst.msk [vmem:[%s1477 + $0x120] sm:$0xff] %vm588, %v1438
    %1483 = vst.msk [vmem:[%s1477 + $0x128] sm:$0x3f] %vm590, %v1440
    %1484 = vst.msk [vmem:[%s1477 + $0x1b0] sm:$0xff] %vm588, %v1442
    %1485 = vst.msk [vmem:[%s1477 + $0x1b8] sm:$0x3f] %vm590, %v1444
    %1486 = vst.msk [vmem:[%s1477 + $0x240] sm:$0xff] %vm588, %v1446
    %1487 = vst.msk [vmem:[%s1477 + $0x248] sm:$0x3f] %vm590, %v1448
    %1488 = vst.msk [vmem:[%s1477 + $0x2d0] sm:$0xff] %vm588, %v1450
    %1489 = vst.msk [vmem:[%s1477 + $0x2d8] sm:$0x3f] %vm590, %v1452
    %1490 = vst.msk [vmem:[%s1477 + $0x360] sm:$0xff] %vm588, %v1454
    %1491 = vst.msk [vmem:[%s1477 + $0x368] sm:$0x3f] %vm590, %v1456
    %1492 = vst.msk [vmem:[%s1477 + $0x3f0] sm:$0xff] %vm588, %v1458
    %1493 = vst.msk [vmem:[%s1477 + $0x3f8] sm:$0x3f] %vm590, %v1460
    // Predicated region
    $region10: #{tpu_custom_call.1} parent=1 // pred_check
      _
    $region11: #{tpu_custom_call.1} parent=1 // pred_check_branch
      %1495 = sbr.rel (0) target = $region13
    $region12: #{tpu_custom_call.1} parent=1 // pred_region
      _
    $region13: #{tpu_custom_call.1} parent=1 // pred_fallthru
      _
    // Predicated region
    $region14: #{tpu_custom_call.1} parent=1 // pred_check
      _
    $region15: #{tpu_custom_call.1} parent=1 // pred_check_branch
      %1497 = sbr.rel (0) target = $region17
    $region16: #{tpu_custom_call.1} parent=1 // pred_region
      _
    $region17: #{tpu_custom_call.1} parent=1 // pred_fallthru
      _
    %1498 = vsyncpa [#allocation3], 1

</llo_original>
